<compile_context>
chip_gen: v7x
topology: tpu7x:2x2x1
jax: 0.10.0
libtpu: 0.0.40
codegen_flags: <defaults>
</compile_context>

<pallas_src>
import functools

import jax
import jax.numpy as jnp
from jax import lax
from jax.experimental import pallas as pl
from jax.experimental.pallas import tpu as pltpu


# ----------------------------------------------------------------------------
# Static layer plan: tuple of (kind, cin, cout, L_conv)
#   kind: "down" -> conv+BN+LReLU then MaxPool(2)
#         "mid"  -> conv+BN+LReLU (bottleneck)
#         "up"   -> nearest Upsample(2) then conv+BN+LReLU
#         "top"  -> conv then tanh
#   L_conv: sequence length at which that layer's conv runs.
# ----------------------------------------------------------------------------
def build_plan(unet_c, L):
    plan = []
    l = L
    for cin, cout in zip(unet_c[:-1], unet_c[1:]):
        plan.append(("down", cin, cout, l))
        l //= 2
    plan.append(("mid", unet_c[-1], unet_c[-1], l))
    for cin, cout in zip(unet_c[-1:0:-1], unet_c[-2::-1]):
        l *= 2
        plan.append(("up", cin, cout, l))
    plan.append(("top", unet_c[0], 2, l))
    return tuple(plan)


# ----------------------------------------------------------------------------
# Tiny constant selection matrices (built in-kernel from iota; all-dot design
# avoids pad / reshape / strided ops inside the kernel).
# ----------------------------------------------------------------------------
def _shift_prev_mat(L):
    # (h @ M)[:, t] = h[:, t-1], zero at t=0
    r = lax.broadcasted_iota(jnp.int32, (L, L), 0)
    c = lax.broadcasted_iota(jnp.int32, (L, L), 1)
    return (r == c - 1).astype(jnp.float32)


def _shift_next_mat(L):
    # (h @ M)[:, t] = h[:, t+1], zero at t=L-1
    r = lax.broadcasted_iota(jnp.int32, (L, L), 0)
    c = lax.broadcasted_iota(jnp.int32, (L, L), 1)
    return (r == c + 1).astype(jnp.float32)


def _pool_pick_mat(L, parity):
    # (h @ M)[:, t] = h[:, 2t + parity]      -> (L, L//2)
    r = lax.broadcasted_iota(jnp.int32, (L, L // 2), 0)
    c = lax.broadcasted_iota(jnp.int32, (L, L // 2), 1)
    return (r == 2 * c + parity).astype(jnp.float32)


def _upsample_mat(L_out):
    # (h @ M)[:, t] = h[:, t // 2]           -> (L_out//2, L_out) nearest x2
    L_in = L_out // 2
    r = lax.broadcasted_iota(jnp.int32, (L_in, L_out), 0)
    c = lax.broadcasted_iota(jnp.int32, (L_in, L_out), 1)
    return ((c == 2 * r) | (c == 2 * r + 1)).astype(jnp.float32)


# ----------------------------------------------------------------------------
# Fused whole-network kernel (one grid step == one batch element).
# ----------------------------------------------------------------------------
def _make_unet_kernel(plan, negative_slope=0.2):
    n = len(plan)

    def kernel(*refs):
        x_ref = refs[0]
        layer_refs = refs[1:1 + 2 * n]     # alternating (w_ref, b_ref)
        o_ref = refs[1 + 2 * n]
        stk_ref = refs[2 + 2 * n]          # VMEM scratch for tap stacking

        f32 = jnp.float32
        mats = {}

        def mat(name, L, parity=0):        # memoize per (name, L) in the trace
            key = (name, L, parity)
            if key not in mats:
                if name == "prev":
                    mats[key] = _shift_prev_mat(L)
                elif name == "next":
                    mats[key] = _shift_next_mat(L)
                elif name == "pool":
                    mats[key] = _pool_pick_mat(L, parity)
                else:  # "up"
                    mats[key] = _upsample_mat(L)
            return mats[key]

        h = x_ref[0].astype(f32)                               # (cin0, L0)

        for idx, (kind, cin, cout, L) in enumerate(plan):
            w_ref = layer_refs[2 * idx]                        # (cout, 3*cin), BN-folded
            b_ref = layer_refs[2 * idx + 1]                    # (cout, 1),     BN-folded

            if kind == "up":                                   # nearest upsample x2
                h = jnp.dot(h, mat("up", L), preferred_element_type=f32)

            # Conv1d(k=3, stride=1, pad=1) as ONE matmul: stack the three
            # zero-padded taps along the contraction axis in VMEM scratch.
            h_m1 = jnp.dot(h, mat("prev", L), preferred_element_type=f32)
            h_p1 = jnp.dot(h, mat("next", L), preferred_element_type=f32)
            stk_ref[0:cin, 0:L] = h_m1
            stk_ref[cin:2 * cin, 0:L] = h
            stk_ref[2 * cin:3 * cin, 0:L] = h_p1

            acc = jnp.dot(w_ref[...], stk_ref[0:3 * cin, 0:L],
                          preferred_element_type=f32) + b_ref[...]

            if kind == "top":
                h = jnp.tanh(acc)                              # top conv -> tanh
            else:
                h = jnp.where(acc >= 0, acc, negative_slope * acc)   # LeakyReLU(0.2)
                if kind == "down":                             # MaxPool1d(2)
                    h = jnp.maximum(
                        jnp.dot(h, mat("pool", L, 0), preferred_element_type=f32),
                        jnp.dot(h, mat("pool", L, 1), preferred_element_type=f32))

        o_ref[0] = h.astype(o_ref.dtype)

    return kernel


def unet_forward_pallas(plan, params, x):
    B, c0, L = x.shape
    cout_top = plan[-1][2]
    max_cin = max(p[1] for p in plan)
    max_len = max(p[3] for p in plan)

    in_specs = [pl.BlockSpec((1, c0, L), lambda i: (i, 0, 0))]
    args = [x]
    for (w, b) in params:
        in_specs.append(pl.BlockSpec(w.shape, lambda i: (0, 0)))
        in_specs.append(pl.BlockSpec(b.shape, lambda i: (0, 0)))
        args += [w, b]

    return pl.pallas_call(
        _make_unet_kernel(plan),
        out_shape=jax.ShapeDtypeStruct((B, cout_top, L), x.dtype),
        grid=(B,),
        in_specs=in_specs,
        out_specs=pl.BlockSpec((1, cout_top, L), lambda i: (i, 0, 0)),
        scratch_shapes=[pltpu.VMEM((3 * max_cin, max_len), jnp.float32)],
        compiler_params=pltpu.CompilerParams(
            dimension_semantics=("parallel",)),   # batch axis -> both TCs on v7x
    )(*args)


# ----------------------------------------------------------------------------
# Parameter construction: N(0, 0.02) weights (as in __initialize_weights),
# BN folded into the conv at build time, weights pre-reshaped to (Cout, 3*Cin).
# ----------------------------------------------------------------------------
def init_generator_params(key, plan):
    eps = 1e-5
    params = []
    keys = jax.random.split(key, len(plan))
    for (kind, cin, cout, _), k in zip(plan, keys):
        k1, k2, k3 = jax.random.split(k, 3)
        w = 0.02 * jax.random.normal(k1, (cout, cin, 3), jnp.float32)
        b = 0.02 * jax.random.normal(k2, (cout,), jnp.float32)
        if kind != "top":
            # eval-mode BN (running_mean=0, running_var=1) folded into conv
            gamma = 0.02 * jax.random.normal(k3, (cout,), jnp.float32)
            beta = jnp.zeros((cout,), jnp.float32)
            scale = gamma / jnp.sqrt(1.0 + eps)
            w = w * scale[:, None, None]
            b = b * scale + beta
        # flat layout: w_flat[co, k*cin + ci] = w[co, ci, k]
        w_flat = jnp.transpose(w, (0, 2, 1)).reshape(cout, 3 * cin)
        params.append((w_flat, b.reshape(cout, 1)))
    # NOTE: Mixer parameters are never used in Generator.forward -> not built.
    return tuple(params)


# ----------------------------------------------------------------------------
# Generator forward (== Unet.forward; onsets/offsets are ignored, as in torch)
# ----------------------------------------------------------------------------
def generator_forward(plan, params, x, onsets, offsets):
    del onsets, offsets
    return unet_forward_pallas(plan, params, x)


# ----------------------------------------------------------------------------
if __name__ == "__main__":
    unet_c = [2, 4, 8]            # Unet channels: 2 -> 4 -> 8
    mixer_c = [2, 4, 2]           # constructed in PyTorch but unused in forward
    B, L = 2, 16                  # L must be divisible by 2**(len(unet_c)-1)

    plan = build_plan(unet_c, L)

    key = jax.random.PRNGKey(0)
    kp, kx, ko, kf = jax.random.split(key, 4)
    params = init_generator_params(kp, plan)

    x = jax.random.normal(kx, (B, unet_c[0], L), jnp.float32)   # (B, 2, L)
    onsets = jax.random.normal(ko, (B, L), jnp.float32)          # unused
    offsets = jax.random.normal(kf, (B, L), jnp.float32)         # unused

    fwd = jax.jit(generator_forward, static_argnums=0)
    out = jax.block_until_ready(fwd(plan, params, x, onsets, offsets))

    assert out.shape == (B, 2, L), out.shape
    assert bool(jnp.all(jnp.isfinite(out))), "non-finite output"
    assert bool(jnp.all(jnp.abs(out) <= 1.0)), "tanh output out of range"
    print("KERNEL_OK")
</pallas_src>

<mosaic_0001>
module attributes {stable_mosaic.version = 11 : i64} {
  func.func @kernel(%arg0: i32, %arg1: memref<1x2x16xf32, #tpu.memory_space<vmem>>, %arg2: memref<4x6xf32, #tpu.memory_space<vmem>>, %arg3: memref<4x1xf32, #tpu.memory_space<vmem>>, %arg4: memref<8x12xf32, #tpu.memory_space<vmem>>, %arg5: memref<8x1xf32, #tpu.memory_space<vmem>>, %arg6: memref<8x24xf32, #tpu.memory_space<vmem>>, %arg7: memref<8x1xf32, #tpu.memory_space<vmem>>, %arg8: memref<4x24xf32, #tpu.memory_space<vmem>>, %arg9: memref<4x1xf32, #tpu.memory_space<vmem>>, %arg10: memref<2x12xf32, #tpu.memory_space<vmem>>, %arg11: memref<2x1xf32, #tpu.memory_space<vmem>>, %arg12: memref<2x6xf32, #tpu.memory_space<vmem>>, %arg13: memref<2x1xf32, #tpu.memory_space<vmem>>, %arg14: memref<1x2x16xf32, #tpu.memory_space<vmem>>, %arg15: memref<24x16xf32, #tpu.memory_space<vmem>>) attributes {dimension_semantics = [#tpu.dimension_semantics<parallel>], iteration_bounds = array<i64: 2>, scalar_prefetch = 0 : i64, scratch_operands = 1 : i64, tpu.core_type = #tpu.core_type<tc>, window_params = [{transform_indices = @transform_0, window_bounds = array<i64: 1, 2, 16>}, {pipeline_mode = #tpu.pipeline_mode<synchronous>, transform_indices = @transform_1, window_bounds = array<i64: 4, 6>}, {pipeline_mode = #tpu.pipeline_mode<synchronous>, transform_indices = @transform_2, window_bounds = array<i64: 4, 1>}, {pipeline_mode = #tpu.pipeline_mode<synchronous>, transform_indices = @transform_3, window_bounds = array<i64: 8, 12>}, {pipeline_mode = #tpu.pipeline_mode<synchronous>, transform_indices = @transform_4, window_bounds = array<i64: 8, 1>}, {pipeline_mode = #tpu.pipeline_mode<synchronous>, transform_indices = @transform_5, window_bounds = array<i64: 8, 24>}, {pipeline_mode = #tpu.pipeline_mode<synchronous>, transform_indices = @transform_6, window_bounds = array<i64: 8, 1>}, {pipeline_mode = #tpu.pipeline_mode<synchronous>, transform_indices = @transform_7, window_bounds = array<i64: 4, 24>}, {pipeline_mode = #tpu.pipeline_mode<synchronous>, transform_indices = @transform_8, window_bounds = array<i64: 4, 1>}, {pipeline_mode = #tpu.pipeline_mode<synchronous>, transform_indices = @transform_9, window_bounds = array<i64: 2, 12>}, {pipeline_mode = #tpu.pipeline_mode<synchronous>, transform_indices = @transform_10, window_bounds = array<i64: 2, 1>}, {pipeline_mode = #tpu.pipeline_mode<synchronous>, transform_indices = @transform_11, window_bounds = array<i64: 2, 6>}, {pipeline_mode = #tpu.pipeline_mode<synchronous>, transform_indices = @transform_12, window_bounds = array<i64: 2, 1>}, {transform_indices = @transform_13, window_bounds = array<i64: 1, 2, 16>}]} {
    %c0 = arith.constant 0 : index
    %c0_0 = arith.constant 0 : index
    %c0_1 = arith.constant 0 : index
    %0 = vector.load %arg1[%c0, %c0_0, %c0_1] : memref<1x2x16xf32, #tpu.memory_space<vmem>>, vector<1x2x16xf32>
    %1 = vector.shape_cast %0 : vector<1x2x16xf32> to vector<2x16xf32>
    %2 = tpu.iota {dimensions = array<i32: 0>} : vector<16x16xi32>
    %3 = tpu.iota {dimensions = array<i32: 1>} : vector<16x16xi32>
    %c1_i32 = arith.constant 1 : i32
    %4 = vector.broadcast %c1_i32 : i32 to vector<16x16xi32>
    %5 = arith.subi %3, %4 : vector<16x16xi32>
    %6 = arith.cmpi eq, %2, %5 : vector<16x16xi32>
    %7 = arith.extui %6 : vector<16x16xi1> to vector<16x16xi32>
    %8 = arith.sitofp %7 : vector<16x16xi32> to vector<16x16xf32>
    %cst = arith.constant dense<0.000000e+00> : vector<2x16xf32>
    %9 = tpu.matmul %1, %8, %cst {dimension_numbers = #tpu.dot_dimension_numbers<[1], [0], [0], [1], [0, 0, 1, 1], [], []>} : vector<2x16xf32>, vector<16x16xf32>, vector<2x16xf32> -> vector<2x16xf32>
    %10 = tpu.iota {dimensions = array<i32: 0>} : vector<16x16xi32>
    %11 = tpu.iota {dimensions = array<i32: 1>} : vector<16x16xi32>
    %c1_i32_2 = arith.constant 1 : i32
    %12 = vector.broadcast %c1_i32_2 : i32 to vector<16x16xi32>
    %13 = arith.addi %11, %12 : vector<16x16xi32>
    %14 = arith.cmpi eq, %10, %13 : vector<16x16xi32>
    %15 = arith.extui %14 : vector<16x16xi1> to vector<16x16xi32>
    %16 = arith.sitofp %15 : vector<16x16xi32> to vector<16x16xf32>
    %cst_3 = arith.constant dense<0.000000e+00> : vector<2x16xf32>
    %17 = tpu.matmul %1, %16, %cst_3 {dimension_numbers = #tpu.dot_dimension_numbers<[1], [0], [0], [1], [0, 0, 1, 1], [], []>} : vector<2x16xf32>, vector<16x16xf32>, vector<2x16xf32> -> vector<2x16xf32>
    %c0_4 = arith.constant 0 : index
    %c0_5 = arith.constant 0 : index
    %18 = vector.load %arg15[%c0_4, %c0_5] : memref<24x16xf32, #tpu.memory_space<vmem>>, vector<2x16xf32>
    tpu.vector_store %arg15[%c0_4, %c0_5], %9 {strides = array<i32>} : memref<24x16xf32, #tpu.memory_space<vmem>>, vector<2x16xf32>,
    %c2 = arith.constant 2 : index
    %c0_6 = arith.constant 0 : index
    %19 = vector.load %arg15[%c2, %c0_6] : memref<24x16xf32, #tpu.memory_space<vmem>>, vector<2x16xf32>
    tpu.vector_store %arg15[%c2, %c0_6], %1 {strides = array<i32>} : memref<24x16xf32, #tpu.memory_space<vmem>>, vector<2x16xf32>,
    %c4 = arith.constant 4 : index
    %c0_7 = arith.constant 0 : index
    %20 = vector.load %arg15[%c4, %c0_7] : memref<24x16xf32, #tpu.memory_space<vmem>>, vector<2x16xf32>
    tpu.vector_store %arg15[%c4, %c0_7], %17 {strides = array<i32>} : memref<24x16xf32, #tpu.memory_space<vmem>>, vector<2x16xf32>,
    %c0_8 = arith.constant 0 : index
    %c0_9 = arith.constant 0 : index
    %21 = vector.load %arg2[%c0_8, %c0_9] : memref<4x6xf32, #tpu.memory_space<vmem>>, vector<4x6xf32>
    %c0_10 = arith.constant 0 : index
    %c0_11 = arith.constant 0 : index
    %22 = vector.load %arg15[%c0_10, %c0_11] : memref<24x16xf32, #tpu.memory_space<vmem>>, vector<6x16xf32>
    %cst_12 = arith.constant dense<0.000000e+00> : vector<4x16xf32>
    %23 = tpu.matmul %21, %22, %cst_12 {dimension_numbers = #tpu.dot_dimension_numbers<[1], [0], [0], [1], [0, 0, 1, 1], [], []>} : vector<4x6xf32>, vector<6x16xf32>, vector<4x16xf32> -> vector<4x16xf32>
    %c0_13 = arith.constant 0 : index
    %c0_14 = arith.constant 0 : index
    %24 = vector.load %arg3[%c0_13, %c0_14] : memref<4x1xf32, #tpu.memory_space<vmem>>, vector<4x1xf32>
    %25 = vector.broadcast %24 : vector<4x1xf32> to vector<4x16xf32>
    %26 = arith.addf %23, %25 : vector<4x16xf32>
    %cst_15 = arith.constant 0.000000e+00 : f32
    %27 = vector.broadcast %cst_15 : f32 to vector<4x16xf32>
    %28 = arith.cmpf oge, %26, %27 : vector<4x16xf32>
    %cst_16 = arith.constant 2.000000e-01 : f32
    %29 = vector.broadcast %cst_16 : f32 to vector<4x16xf32>
    %30 = arith.mulf %29, %26 : vector<4x16xf32>
    %31 = arith.select %28, %26, %30 : vector<4x16xi1>, vector<4x16xf32>
    %32 = tpu.iota {dimensions = array<i32: 0>} : vector<16x8xi32>
    %33 = tpu.iota {dimensions = array<i32: 1>} : vector<16x8xi32>
    %c2_i32 = arith.constant 2 : i32
    %34 = vector.broadcast %c2_i32 : i32 to vector<16x8xi32>
    %35 = arith.muli %34, %33 : vector<16x8xi32>
    %c0_i32 = arith.constant 0 : i32
    %36 = vector.broadcast %c0_i32 : i32 to vector<16x8xi32>
    %37 = arith.addi %35, %36 : vector<16x8xi32>
    %38 = arith.cmpi eq, %32, %37 : vector<16x8xi32>
    %39 = arith.extui %38 : vector<16x8xi1> to vector<16x8xi32>
    %40 = arith.sitofp %39 : vector<16x8xi32> to vector<16x8xf32>
    %cst_17 = arith.constant dense<0.000000e+00> : vector<4x8xf32>
    %41 = tpu.matmul %31, %40, %cst_17 {dimension_numbers = #tpu.dot_dimension_numbers<[1], [0], [0], [1], [0, 0, 1, 1], [], []>} : vector<4x16xf32>, vector<16x8xf32>, vector<4x8xf32> -> vector<4x8xf32>
    %42 = tpu.iota {dimensions = array<i32: 0>} : vector<16x8xi32>
    %43 = tpu.iota {dimensions = array<i32: 1>} : vector<16x8xi32>
    %c2_i32_18 = arith.constant 2 : i32
    %44 = vector.broadcast %c2_i32_18 : i32 to vector<16x8xi32>
    %45 = arith.muli %44, %43 : vector<16x8xi32>
    %c1_i32_19 = arith.constant 1 : i32
    %46 = vector.broadcast %c1_i32_19 : i32 to vector<16x8xi32>
    %47 = arith.addi %45, %46 : vector<16x8xi32>
    %48 = arith.cmpi eq, %42, %47 : vector<16x8xi32>
    %49 = arith.extui %48 : vector<16x8xi1> to vector<16x8xi32>
    %50 = arith.sitofp %49 : vector<16x8xi32> to vector<16x8xf32>
    %cst_20 = arith.constant dense<0.000000e+00> : vector<4x8xf32>
    %51 = tpu.matmul %31, %50, %cst_20 {dimension_numbers = #tpu.dot_dimension_numbers<[1], [0], [0], [1], [0, 0, 1, 1], [], []>} : vector<4x16xf32>, vector<16x8xf32>, vector<4x8xf32> -> vector<4x8xf32>
    %52 = arith.maximumf %41, %51 : vector<4x8xf32>
    %53 = tpu.iota {dimensions = array<i32: 0>} : vector<8x8xi32>
    %54 = tpu.iota {dimensions = array<i32: 1>} : vector<8x8xi32>
    %c1_i32_21 = arith.constant 1 : i32
    %55 = vector.broadcast %c1_i32_21 : i32 to vector<8x8xi32>
    %56 = arith.subi %54, %55 : vector<8x8xi32>
    %57 = arith.cmpi eq, %53, %56 : vector<8x8xi32>
    %58 = arith.extui %57 : vector<8x8xi1> to vector<8x8xi32>
    %59 = arith.sitofp %58 : vector<8x8xi32> to vector<8x8xf32>
    %cst_22 = arith.constant dense<0.000000e+00> : vector<4x8xf32>
    %60 = tpu.matmul %52, %59, %cst_22 {dimension_numbers = #tpu.dot_dimension_numbers<[1], [0], [0], [1], [0, 0, 1, 1], [], []>} : vector<4x8xf32>, vector<8x8xf32>, vector<4x8xf32> -> vector<4x8xf32>
    %61 = tpu.iota {dimensions = array<i32: 0>} : vector<8x8xi32>
    %62 = tpu.iota {dimensions = array<i32: 1>} : vector<8x8xi32>
    %c1_i32_23 = arith.constant 1 : i32
    %63 = vector.broadcast %c1_i32_23 : i32 to vector<8x8xi32>
    %64 = arith.addi %62, %63 : vector<8x8xi32>
    %65 = arith.cmpi eq, %61, %64 : vector<8x8xi32>
    %66 = arith.extui %65 : vector<8x8xi1> to vector<8x8xi32>
    %67 = arith.sitofp %66 : vector<8x8xi32> to vector<8x8xf32>
    %cst_24 = arith.constant dense<0.000000e+00> : vector<4x8xf32>
    %68 = tpu.matmul %52, %67, %cst_24 {dimension_numbers = #tpu.dot_dimension_numbers<[1], [0], [0], [1], [0, 0, 1, 1], [], []>} : vector<4x8xf32>, vector<8x8xf32>, vector<4x8xf32> -> vector<4x8xf32>
    %c0_25 = arith.constant 0 : index
    %c0_26 = arith.constant 0 : index
    %69 = vector.load %arg15[%c0_25, %c0_26] : memref<24x16xf32, #tpu.memory_space<vmem>>, vector<4x8xf32>
    tpu.vector_store %arg15[%c0_25, %c0_26], %60 {strides = array<i32>} : memref<24x16xf32, #tpu.memory_space<vmem>>, vector<4x8xf32>,
    %c4_27 = arith.constant 4 : index
    %c0_28 = arith.constant 0 : index
    %70 = vector.load %arg15[%c4_27, %c0_28] : memref<24x16xf32, #tpu.memory_space<vmem>>, vector<4x8xf32>
    tpu.vector_store %arg15[%c4_27, %c0_28], %52 {strides = array<i32>} : memref<24x16xf32, #tpu.memory_space<vmem>>, vector<4x8xf32>,
    %c8 = arith.constant 8 : index
    %c0_29 = arith.constant 0 : index
    %71 = vector.load %arg15[%c8, %c0_29] : memref<24x16xf32, #tpu.memory_space<vmem>>, vector<4x8xf32>
    tpu.vector_store %arg15[%c8, %c0_29], %68 {strides = array<i32>} : memref<24x16xf32, #tpu.memory_space<vmem>>, vector<4x8xf32>,
    %c0_30 = arith.constant 0 : index
    %c0_31 = arith.constant 0 : index
    %72 = vector.load %arg4[%c0_30, %c0_31] : memref<8x12xf32, #tpu.memory_space<vmem>>, vector<8x12xf32>
    %c0_32 = arith.constant 0 : index
    %c0_33 = arith.constant 0 : index
    %73 = vector.load %arg15[%c0_32, %c0_33] : memref<24x16xf32, #tpu.memory_space<vmem>>, vector<12x8xf32>
    %cst_34 = arith.constant dense<0.000000e+00> : vector<8x8xf32>
    %74 = tpu.matmul %72, %73, %cst_34 {dimension_numbers = #tpu.dot_dimension_numbers<[1], [0], [0], [1], [0, 0, 1, 1], [], []>} : vector<8x12xf32>, vector<12x8xf32>, vector<8x8xf32> -> vector<8x8xf32>
    %c0_35 = arith.constant 0 : index
    %c0_36 = arith.constant 0 : index
    %75 = vector.load %arg5[%c0_35, %c0_36] : memref<8x1xf32, #tpu.memory_space<vmem>>, vector<8x1xf32>
    %76 = vector.broadcast %75 : vector<8x1xf32> to vector<8x8xf32>
    %77 = arith.addf %74, %76 : vector<8x8xf32>
    %cst_37 = arith.constant 0.000000e+00 : f32
    %78 = vector.broadcast %cst_37 : f32 to vector<8x8xf32>
    %79 = arith.cmpf oge, %77, %78 : vector<8x8xf32>
    %cst_38 = arith.constant 2.000000e-01 : f32
    %80 = vector.broadcast %cst_38 : f32 to vector<8x8xf32>
    %81 = arith.mulf %80, %77 : vector<8x8xf32>
    %82 = arith.select %79, %77, %81 : vector<8x8xi1>, vector<8x8xf32>
    %83 = tpu.iota {dimensions = array<i32: 0>} : vector<8x4xi32>
    %84 = tpu.iota {dimensions = array<i32: 1>} : vector<8x4xi32>
    %c2_i32_39 = arith.constant 2 : i32
    %85 = vector.broadcast %c2_i32_39 : i32 to vector<8x4xi32>
    %86 = arith.muli %85, %84 : vector<8x4xi32>
    %c0_i32_40 = arith.constant 0 : i32
    %87 = vector.broadcast %c0_i32_40 : i32 to vector<8x4xi32>
    %88 = arith.addi %86, %87 : vector<8x4xi32>
    %89 = arith.cmpi eq, %83, %88 : vector<8x4xi32>
    %90 = arith.extui %89 : vector<8x4xi1> to vector<8x4xi32>
    %91 = arith.sitofp %90 : vector<8x4xi32> to vector<8x4xf32>
    %cst_41 = arith.constant dense<0.000000e+00> : vector<8x4xf32>
    %92 = tpu.matmul %82, %91, %cst_41 {dimension_numbers = #tpu.dot_dimension_numbers<[1], [0], [0], [1], [0, 0, 1, 1], [], []>} : vector<8x8xf32>, vector<8x4xf32>, vector<8x4xf32> -> vector<8x4xf32>
    %93 = tpu.iota {dimensions = array<i32: 0>} : vector<8x4xi32>
    %94 = tpu.iota {dimensions = array<i32: 1>} : vector<8x4xi32>
    %c2_i32_42 = arith.constant 2 : i32
    %95 = vector.broadcast %c2_i32_42 : i32 to vector<8x4xi32>
    %96 = arith.muli %95, %94 : vector<8x4xi32>
    %c1_i32_43 = arith.constant 1 : i32
    %97 = vector.broadcast %c1_i32_43 : i32 to vector<8x4xi32>
    %98 = arith.addi %96, %97 : vector<8x4xi32>
    %99 = arith.cmpi eq, %93, %98 : vector<8x4xi32>
    %100 = arith.extui %99 : vector<8x4xi1> to vector<8x4xi32>
    %101 = arith.sitofp %100 : vector<8x4xi32> to vector<8x4xf32>
    %cst_44 = arith.constant dense<0.000000e+00> : vector<8x4xf32>
    %102 = tpu.matmul %82, %101, %cst_44 {dimension_numbers = #tpu.dot_dimension_numbers<[1], [0], [0], [1], [0, 0, 1, 1], [], []>} : vector<8x8xf32>, vector<8x4xf32>, vector<8x4xf32> -> vector<8x4xf32>
    %103 = arith.maximumf %92, %102 : vector<8x4xf32>
    %104 = tpu.iota {dimensions = array<i32: 0>} : vector<4x4xi32>
    %105 = tpu.iota {dimensions = array<i32: 1>} : vector<4x4xi32>
    %c1_i32_45 = arith.constant 1 : i32
    %106 = vector.broadcast %c1_i32_45 : i32 to vector<4x4xi32>
    %107 = arith.subi %105, %106 : vector<4x4xi32>
    %108 = arith.cmpi eq, %104, %107 : vector<4x4xi32>
    %109 = arith.extui %108 : vector<4x4xi1> to vector<4x4xi32>
    %110 = arith.sitofp %109 : vector<4x4xi32> to vector<4x4xf32>
    %cst_46 = arith.constant dense<0.000000e+00> : vector<8x4xf32>
    %111 = tpu.matmul %103, %110, %cst_46 {dimension_numbers = #tpu.dot_dimension_numbers<[1], [0], [0], [1], [0, 0, 1, 1], [], []>} : vector<8x4xf32>, vector<4x4xf32>, vector<8x4xf32> -> vector<8x4xf32>
    %112 = tpu.iota {dimensions = array<i32: 0>} : vector<4x4xi32>
    %113 = tpu.iota {dimensions = array<i32: 1>} : vector<4x4xi32>
    %c1_i32_47 = arith.constant 1 : i32
    %114 = vector.broadcast %c1_i32_47 : i32 to vector<4x4xi32>
    %115 = arith.addi %113, %114 : vector<4x4xi32>
    %116 = arith.cmpi eq, %112, %115 : vector<4x4xi32>
    %117 = arith.extui %116 : vector<4x4xi1> to vector<4x4xi32>
    %118 = arith.sitofp %117 : vector<4x4xi32> to vector<4x4xf32>
    %cst_48 = arith.constant dense<0.000000e+00> : vector<8x4xf32>
    %119 = tpu.matmul %103, %118, %cst_48 {dimension_numbers = #tpu.dot_dimension_numbers<[1], [0], [0], [1], [0, 0, 1, 1], [], []>} : vector<8x4xf32>, vector<4x4xf32>, vector<8x4xf32> -> vector<8x4xf32>
    %c0_49 = arith.constant 0 : index
    %c0_50 = arith.constant 0 : index
    %120 = vector.load %arg15[%c0_49, %c0_50] : memref<24x16xf32, #tpu.memory_space<vmem>>, vector<8x4xf32>
    tpu.vector_store %arg15[%c0_49, %c0_50], %111 {strides = array<i32>} : memref<24x16xf32, #tpu.memory_space<vmem>>, vector<8x4xf32>,
    %c8_51 = arith.constant 8 : index
    %c0_52 = arith.constant 0 : index
    %121 = vector.load %arg15[%c8_51, %c0_52] : memref<24x16xf32, #tpu.memory_space<vmem>>, vector<8x4xf32>
    tpu.vector_store %arg15[%c8_51, %c0_52], %103 {strides = array<i32>} : memref<24x16xf32, #tpu.memory_space<vmem>>, vector<8x4xf32>,
    %c16 = arith.constant 16 : index
    %c0_53 = arith.constant 0 : index
    %122 = vector.load %arg15[%c16, %c0_53] : memref<24x16xf32, #tpu.memory_space<vmem>>, vector<8x4xf32>
    tpu.vector_store %arg15[%c16, %c0_53], %119 {strides = array<i32>} : memref<24x16xf32, #tpu.memory_space<vmem>>, vector<8x4xf32>,
    %c0_54 = arith.constant 0 : index
    %c0_55 = arith.constant 0 : index
    %123 = vector.load %arg6[%c0_54, %c0_55] : memref<8x24xf32, #tpu.memory_space<vmem>>, vector<8x24xf32>
    %c0_56 = arith.constant 0 : index
    %c0_57 = arith.constant 0 : index
    %124 = vector.load %arg15[%c0_56, %c0_57] : memref<24x16xf32, #tpu.memory_space<vmem>>, vector<24x4xf32>
    %cst_58 = arith.constant dense<0.000000e+00> : vector<8x4xf32>
    %125 = tpu.matmul %123, %124, %cst_58 {dimension_numbers = #tpu.dot_dimension_numbers<[1], [0], [0], [1], [0, 0, 1, 1], [], []>} : vector<8x24xf32>, vector<24x4xf32>, vector<8x4xf32> -> vector<8x4xf32>
    %c0_59 = arith.constant 0 : index
    %c0_60 = arith.constant 0 : index
    %126 = vector.load %arg7[%c0_59, %c0_60] : memref<8x1xf32, #tpu.memory_space<vmem>>, vector<8x1xf32>
    %127 = vector.broadcast %126 : vector<8x1xf32> to vector<8x4xf32>
    %128 = arith.addf %125, %127 : vector<8x4xf32>
    %cst_61 = arith.constant 0.000000e+00 : f32
    %129 = vector.broadcast %cst_61 : f32 to vector<8x4xf32>
    %130 = arith.cmpf oge, %128, %129 : vector<8x4xf32>
    %cst_62 = arith.constant 2.000000e-01 : f32
    %131 = vector.broadcast %cst_62 : f32 to vector<8x4xf32>
    %132 = arith.mulf %131, %128 : vector<8x4xf32>
    %133 = arith.select %130, %128, %132 : vector<8x4xi1>, vector<8x4xf32>
    %134 = tpu.iota {dimensions = array<i32: 0>} : vector<4x8xi32>
    %135 = tpu.iota {dimensions = array<i32: 1>} : vector<4x8xi32>
    %c2_i32_63 = arith.constant 2 : i32
    %136 = vector.broadcast %c2_i32_63 : i32 to vector<4x8xi32>
    %137 = arith.muli %136, %134 : vector<4x8xi32>
    %138 = arith.cmpi eq, %135, %137 : vector<4x8xi32>
    %c2_i32_64 = arith.constant 2 : i32
    %139 = vector.broadcast %c2_i32_64 : i32 to vector<4x8xi32>
    %140 = arith.muli %139, %134 : vector<4x8xi32>
    %c1_i32_65 = arith.constant 1 : i32
    %141 = vector.broadcast %c1_i32_65 : i32 to vector<4x8xi32>
    %142 = arith.addi %140, %141 : vector<4x8xi32>
    %143 = arith.cmpi eq, %135, %142 : vector<4x8xi32>
    %144 = arith.ori %138, %143 : vector<4x8xi1>
    %145 = arith.extui %144 : vector<4x8xi1> to vector<4x8xi32>
    %146 = arith.sitofp %145 : vector<4x8xi32> to vector<4x8xf32>
    %cst_66 = arith.constant dense<0.000000e+00> : vector<8x8xf32>
    %147 = tpu.matmul %133, %146, %cst_66 {dimension_numbers = #tpu.dot_dimension_numbers<[1], [0], [0], [1], [0, 0, 1, 1], [], []>} : vector<8x4xf32>, vector<4x8xf32>, vector<8x8xf32> -> vector<8x8xf32>
    %cst_67 = arith.constant dense<0.000000e+00> : vector<8x8xf32>
    %148 = tpu.matmul %147, %59, %cst_67 {dimension_numbers = #tpu.dot_dimension_numbers<[1], [0], [0], [1], [0, 0, 1, 1], [], []>} : vector<8x8xf32>, vector<8x8xf32>, vector<8x8xf32> -> vector<8x8xf32>
    %cst_68 = arith.constant dense<0.000000e+00> : vector<8x8xf32>
    %149 = tpu.matmul %147, %67, %cst_68 {dimension_numbers = #tpu.dot_dimension_numbers<[1], [0], [0], [1], [0, 0, 1, 1], [], []>} : vector<8x8xf32>, vector<8x8xf32>, vector<8x8xf32> -> vector<8x8xf32>
    %c0_69 = arith.constant 0 : index
    %c0_70 = arith.constant 0 : index
    %150 = vector.load %arg15[%c0_69, %c0_70] : memref<24x16xf32, #tpu.memory_space<vmem>>, vector<8x8xf32>
    tpu.vector_store %arg15[%c0_69, %c0_70], %148 {strides = array<i32>} : memref<24x16xf32, #tpu.memory_space<vmem>>, vector<8x8xf32>,
    %c8_71 = arith.constant 8 : index
    %c0_72 = arith.constant 0 : index
    %151 = vector.load %arg15[%c8_71, %c0_72] : memref<24x16xf32, #tpu.memory_space<vmem>>, vector<8x8xf32>
    tpu.vector_store %arg15[%c8_71, %c0_72], %147 {strides = array<i32>} : memref<24x16xf32, #tpu.memory_space<vmem>>, vector<8x8xf32>,
    %c16_73 = arith.constant 16 : index
    %c0_74 = arith.constant 0 : index
    %152 = vector.load %arg15[%c16_73, %c0_74] : memref<24x16xf32, #tpu.memory_space<vmem>>, vector<8x8xf32>
    tpu.vector_store %arg15[%c16_73, %c0_74], %149 {strides = array<i32>} : memref<24x16xf32, #tpu.memory_space<vmem>>, vector<8x8xf32>,
    %c0_75 = arith.constant 0 : index
    %c0_76 = arith.constant 0 : index
    %153 = vector.load %arg8[%c0_75, %c0_76] : memref<4x24xf32, #tpu.memory_space<vmem>>, vector<4x24xf32>
    %c0_77 = arith.constant 0 : index
    %c0_78 = arith.constant 0 : index
    %154 = vector.load %arg15[%c0_77, %c0_78] : memref<24x16xf32, #tpu.memory_space<vmem>>, vector<24x8xf32>
    %cst_79 = arith.constant dense<0.000000e+00> : vector<4x8xf32>
    %155 = tpu.matmul %153, %154, %cst_79 {dimension_numbers = #tpu.dot_dimension_numbers<[1], [0], [0], [1], [0, 0, 1, 1], [], []>} : vector<4x24xf32>, vector<24x8xf32>, vector<4x8xf32> -> vector<4x8xf32>
    %c0_80 = arith.constant 0 : index
    %c0_81 = arith.constant 0 : index
    %156 = vector.load %arg9[%c0_80, %c0_81] : memref<4x1xf32, #tpu.memory_space<vmem>>, vector<4x1xf32>
    %157 = vector.broadcast %156 : vector<4x1xf32> to vector<4x8xf32>
    %158 = arith.addf %155, %157 : vector<4x8xf32>
    %cst_82 = arith.constant 0.000000e+00 : f32
    %159 = vector.broadcast %cst_82 : f32 to vector<4x8xf32>
    %160 = arith.cmpf oge, %158, %159 : vector<4x8xf32>
    %cst_83 = arith.constant 2.000000e-01 : f32
    %161 = vector.broadcast %cst_83 : f32 to vector<4x8xf32>
    %162 = arith.mulf %161, %158 : vector<4x8xf32>
    %163 = arith.select %160, %158, %162 : vector<4x8xi1>, vector<4x8xf32>
    %164 = tpu.iota {dimensions = array<i32: 0>} : vector<8x16xi32>
    %165 = tpu.iota {dimensions = array<i32: 1>} : vector<8x16xi32>
    %c2_i32_84 = arith.constant 2 : i32
    %166 = vector.broadcast %c2_i32_84 : i32 to vector<8x16xi32>
    %167 = arith.muli %166, %164 : vector<8x16xi32>
    %168 = arith.cmpi eq, %165, %167 : vector<8x16xi32>
    %c2_i32_85 = arith.constant 2 : i32
    %169 = vector.broadcast %c2_i32_85 : i32 to vector<8x16xi32>
    %170 = arith.muli %169, %164 : vector<8x16xi32>
    %c1_i32_86 = arith.constant 1 : i32
    %171 = vector.broadcast %c1_i32_86 : i32 to vector<8x16xi32>
    %172 = arith.addi %170, %171 : vector<8x16xi32>
    %173 = arith.cmpi eq, %165, %172 : vector<8x16xi32>
    %174 = arith.ori %168, %173 : vector<8x16xi1>
    %175 = arith.extui %174 : vector<8x16xi1> to vector<8x16xi32>
    %176 = arith.sitofp %175 : vector<8x16xi32> to vector<8x16xf32>
    %cst_87 = arith.constant dense<0.000000e+00> : vector<4x16xf32>
    %177 = tpu.matmul %163, %176, %cst_87 {dimension_numbers = #tpu.dot_dimension_numbers<[1], [0], [0], [1], [0, 0, 1, 1], [], []>} : vector<4x8xf32>, vector<8x16xf32>, vector<4x16xf32> -> vector<4x16xf32>
    %cst_88 = arith.constant dense<0.000000e+00> : vector<4x16xf32>
    %178 = tpu.matmul %177, %8, %cst_88 {dimension_numbers = #tpu.dot_dimension_numbers<[1], [0], [0], [1], [0, 0, 1, 1], [], []>} : vector<4x16xf32>, vector<16x16xf32>, vector<4x16xf32> -> vector<4x16xf32>
    %cst_89 = arith.constant dense<0.000000e+00> : vector<4x16xf32>
    %179 = tpu.matmul %177, %16, %cst_89 {dimension_numbers = #tpu.dot_dimension_numbers<[1], [0], [0], [1], [0, 0, 1, 1], [], []>} : vector<4x16xf32>, vector<16x16xf32>, vector<4x16xf32> -> vector<4x16xf32>
    %c0_90 = arith.constant 0 : index
    %c0_91 = arith.constant 0 : index
    %180 = vector.load %arg15[%c0_90, %c0_91] : memref<24x16xf32, #tpu.memory_space<vmem>>, vector<4x16xf32>
    tpu.vector_store %arg15[%c0_90, %c0_91], %178 {strides = array<i32>} : memref<24x16xf32, #tpu.memory_space<vmem>>, vector<4x16xf32>,
    %c4_92 = arith.constant 4 : index
    %c0_93 = arith.constant 0 : index
    %181 = vector.load %arg15[%c4_92, %c0_93] : memref<24x16xf32, #tpu.memory_space<vmem>>, vector<4x16xf32>
    tpu.vector_store %arg15[%c4_92, %c0_93], %177 {strides = array<i32>} : memref<24x16xf32, #tpu.memory_space<vmem>>, vector<4x16xf32>,
    %c8_94 = arith.constant 8 : index
    %c0_95 = arith.constant 0 : index
    %182 = vector.load %arg15[%c8_94, %c0_95] : memref<24x16xf32, #tpu.memory_space<vmem>>, vector<4x16xf32>
    tpu.vector_store %arg15[%c8_94, %c0_95], %179 {strides = array<i32>} : memref<24x16xf32, #tpu.memory_space<vmem>>, vector<4x16xf32>,
    %c0_96 = arith.constant 0 : index
    %c0_97 = arith.constant 0 : index
    %183 = vector.load %arg10[%c0_96, %c0_97] : memref<2x12xf32, #tpu.memory_space<vmem>>, vector<2x12xf32>
    %c0_98 = arith.constant 0 : index
    %c0_99 = arith.constant 0 : index
    %184 = vector.load %arg15[%c0_98, %c0_99] : memref<24x16xf32, #tpu.memory_space<vmem>>, vector<12x16xf32>
    %cst_100 = arith.constant dense<0.000000e+00> : vector<2x16xf32>
    %185 = tpu.matmul %183, %184, %cst_100 {dimension_numbers = #tpu.dot_dimension_numbers<[1], [0], [0], [1], [0, 0, 1, 1], [], []>} : vector<2x12xf32>, vector<12x16xf32>, vector<2x16xf32> -> vector<2x16xf32>
    %c0_101 = arith.constant 0 : index
    %c0_102 = arith.constant 0 : index
    %186 = vector.load %arg11[%c0_101, %c0_102] : memref<2x1xf32, #tpu.memory_space<vmem>>, vector<2x1xf32>
    %187 = vector.broadcast %186 : vector<2x1xf32> to vector<2x16xf32>
    %188 = arith.addf %185, %187 : vector<2x16xf32>
    %cst_103 = arith.constant 0.000000e+00 : f32
    %189 = vector.broadcast %cst_103 : f32 to vector<2x16xf32>
    %190 = arith.cmpf oge, %188, %189 : vector<2x16xf32>
    %cst_104 = arith.constant 2.000000e-01 : f32
    %191 = vector.broadcast %cst_104 : f32 to vector<2x16xf32>
    %192 = arith.mulf %191, %188 : vector<2x16xf32>
    %193 = arith.select %190, %188, %192 : vector<2x16xi1>, vector<2x16xf32>
    %cst_105 = arith.constant dense<0.000000e+00> : vector<2x16xf32>
    %194 = tpu.matmul %193, %8, %cst_105 {dimension_numbers = #tpu.dot_dimension_numbers<[1], [0], [0], [1], [0, 0, 1, 1], [], []>} : vector<2x16xf32>, vector<16x16xf32>, vector<2x16xf32> -> vector<2x16xf32>
    %cst_106 = arith.constant dense<0.000000e+00> : vector<2x16xf32>
    %195 = tpu.matmul %193, %16, %cst_106 {dimension_numbers = #tpu.dot_dimension_numbers<[1], [0], [0], [1], [0, 0, 1, 1], [], []>} : vector<2x16xf32>, vector<16x16xf32>, vector<2x16xf32> -> vector<2x16xf32>
    %c0_107 = arith.constant 0 : index
    %c0_108 = arith.constant 0 : index
    %196 = vector.load %arg15[%c0_107, %c0_108] : memref<24x16xf32, #tpu.memory_space<vmem>>, vector<2x16xf32>
    tpu.vector_store %arg15[%c0_107, %c0_108], %194 {strides = array<i32>} : memref<24x16xf32, #tpu.memory_space<vmem>>, vector<2x16xf32>,
    %c2_109 = arith.constant 2 : index
    %c0_110 = arith.constant 0 : index
    %197 = vector.load %arg15[%c2_109, %c0_110] : memref<24x16xf32, #tpu.memory_space<vmem>>, vector<2x16xf32>
    tpu.vector_store %arg15[%c2_109, %c0_110], %193 {strides = array<i32>} : memref<24x16xf32, #tpu.memory_space<vmem>>, vector<2x16xf32>,
    %c4_111 = arith.constant 4 : index
    %c0_112 = arith.constant 0 : index
    %198 = vector.load %arg15[%c4_111, %c0_112] : memref<24x16xf32, #tpu.memory_space<vmem>>, vector<2x16xf32>
    tpu.vector_store %arg15[%c4_111, %c0_112], %195 {strides = array<i32>} : memref<24x16xf32, #tpu.memory_space<vmem>>, vector<2x16xf32>,
    %c0_113 = arith.constant 0 : index
    %c0_114 = arith.constant 0 : index
    %199 = vector.load %arg12[%c0_113, %c0_114] : memref<2x6xf32, #tpu.memory_space<vmem>>, vector<2x6xf32>
    %c0_115 = arith.constant 0 : index
    %c0_116 = arith.constant 0 : index
    %200 = vector.load %arg15[%c0_115, %c0_116] : memref<24x16xf32, #tpu.memory_space<vmem>>, vector<6x16xf32>
    %cst_117 = arith.constant dense<0.000000e+00> : vector<2x16xf32>
    %201 = tpu.matmul %199, %200, %cst_117 {dimension_numbers = #tpu.dot_dimension_numbers<[1], [0], [0], [1], [0, 0, 1, 1], [], []>} : vector<2x6xf32>, vector<6x16xf32>, vector<2x16xf32> -> vector<2x16xf32>
    %c0_118 = arith.constant 0 : index
    %c0_119 = arith.constant 0 : index
    %202 = vector.load %arg13[%c0_118, %c0_119] : memref<2x1xf32, #tpu.memory_space<vmem>>, vector<2x1xf32>
    %203 = vector.broadcast %202 : vector<2x1xf32> to vector<2x16xf32>
    %204 = arith.addf %201, %203 : vector<2x16xf32>
    %205 = math.tanh %204 : vector<2x16xf32>
    %c0_120 = arith.constant 0 : index
    %c0_121 = arith.constant 0 : index
    %c0_122 = arith.constant 0 : index
    %206 = vector.load %arg14[%c0_120, %c0_121, %c0_122] : memref<1x2x16xf32, #tpu.memory_space<vmem>>, vector<1x2x16xf32>
    %207 = vector.shape_cast %206 : vector<1x2x16xf32> to vector<2x16xf32>
    %208 = vector.shape_cast %205 : vector<2x16xf32> to vector<1x2x16xf32>
    tpu.vector_store %arg14[%c0_120, %c0_121, %c0_122], %208 {strides = array<i32>} : memref<1x2x16xf32, #tpu.memory_space<vmem>>, vector<1x2x16xf32>,
    return
  }
  func.func @transform_0(%arg0: i32) -> (i32, i32, i32) {
    %c0_i32 = arith.constant 0 : i32
    %c0_i32_0 = arith.constant 0 : i32
    %c0_i32_1 = arith.constant 0 : i32
    return %arg0, %c0_i32, %c0_i32_0 : i32, i32, i32
  }
  func.func @transform_1(%arg0: i32) -> (i32, i32) {
    %c0_i32 = arith.constant 0 : i32
    %c0_i32_0 = arith.constant 0 : i32
    %c0_i32_1 = arith.constant 0 : i32
    return %c0_i32, %c0_i32_0 : i32, i32
  }
  func.func @transform_2(%arg0: i32) -> (i32, i32) {
    %c0_i32 = arith.constant 0 : i32
    %c0_i32_0 = arith.constant 0 : i32
    %c0_i32_1 = arith.constant 0 : i32
    return %c0_i32, %c0_i32_0 : i32, i32
  }
  func.func @transform_3(%arg0: i32) -> (i32, i32) {
    %c0_i32 = arith.constant 0 : i32
    %c0_i32_0 = arith.constant 0 : i32
    %c0_i32_1 = arith.constant 0 : i32
    return %c0_i32, %c0_i32_0 : i32, i32
  }
  func.func @transform_4(%arg0: i32) -> (i32, i32) {
    %c0_i32 = arith.constant 0 : i32
    %c0_i32_0 = arith.constant 0 : i32
    %c0_i32_1 = arith.constant 0 : i32
    return %c0_i32, %c0_i32_0 : i32, i32
  }
  func.func @transform_5(%arg0: i32) -> (i32, i32) {
    %c0_i32 = arith.constant 0 : i32
    %c0_i32_0 = arith.constant 0 : i32
    %c0_i32_1 = arith.constant 0 : i32
    return %c0_i32, %c0_i32_0 : i32, i32
  }
  func.func @transform_6(%arg0: i32) -> (i32, i32) {
    %c0_i32 = arith.constant 0 : i32
    %c0_i32_0 = arith.constant 0 : i32
    %c0_i32_1 = arith.constant 0 : i32
    return %c0_i32, %c0_i32_0 : i32, i32
  }
  func.func @transform_7(%arg0: i32) -> (i32, i32) {
    %c0_i32 = arith.constant 0 : i32
    %c0_i32_0 = arith.constant 0 : i32
    %c0_i32_1 = arith.constant 0 : i32
    return %c0_i32, %c0_i32_0 : i32, i32
  }
  func.func @transform_8(%arg0: i32) -> (i32, i32) {
    %c0_i32 = arith.constant 0 : i32
    %c0_i32_0 = arith.constant 0 : i32
    %c0_i32_1 = arith.constant 0 : i32
    return %c0_i32, %c0_i32_0 : i32, i32
  }
  func.func @transform_9(%arg0: i32) -> (i32, i32) {
    %c0_i32 = arith.constant 0 : i32
    %c0_i32_0 = arith.constant 0 : i32
    %c0_i32_1 = arith.constant 0 : i32
    return %c0_i32, %c0_i32_0 : i32, i32
  }
  func.func @transform_10(%arg0: i32) -> (i32, i32) {
    %c0_i32 = arith.constant 0 : i32
    %c0_i32_0 = arith.constant 0 : i32
    %c0_i32_1 = arith.constant 0 : i32
    return %c0_i32, %c0_i32_0 : i32, i32
  }
  func.func @transform_11(%arg0: i32) -> (i32, i32) {
    %c0_i32 = arith.constant 0 : i32
    %c0_i32_0 = arith.constant 0 : i32
    %c0_i32_1 = arith.constant 0 : i32
    return %c0_i32, %c0_i32_0 : i32, i32
  }
  func.func @transform_12(%arg0: i32) -> (i32, i32) {
    %c0_i32 = arith.constant 0 : i32
    %c0_i32_0 = arith.constant 0 : i32
    %c0_i32_1 = arith.constant 0 : i32
    return %c0_i32, %c0_i32_0 : i32, i32
  }
  func.func @transform_13(%arg0: i32) -> (i32, i32, i32) {
    %c0_i32 = arith.constant 0 : i32
    %c0_i32_0 = arith.constant 0 : i32
    %c0_i32_1 = arith.constant 0 : i32
    return %arg0, %c0_i32, %c0_i32_0 : i32, i32, i32
  }
}

</mosaic_0001>

<llo_original>
// kernel: generator_forward.1
$region0: #{generator_forward.1}
  #allocation0 [shape = 'u32[]', space=smem, size = 0x4, offset = 0x4, fixed_abs, tag = 'smem constant byte address 0x4 - core index']
  #allocation1 [shape = 'u32[144,128]{1,0:T(1,128)}', space=vmem, size = 0x12000, scoped, tag = 'internal scratch']
  #allocation2 [shape = 'f32[24,16]{1,0:T(8,128)}', space=vmem, size = 0x3000, scoped, tag = 'scratch operand']
  %s0 = inlined_call_operand.vmem [shape: f32[2,2,16], index: 0, kind: input, shape index: {}]
  %s1 = inlined_call_operand.vmem [shape: f32[4,6], index: 1, kind: input, shape index: {}]
  %s2 = inlined_call_operand.vmem [shape: f32[4,1], index: 2, kind: input, shape index: {}]
  %s3 = inlined_call_operand.vmem [shape: f32[8,12], index: 3, kind: input, shape index: {}]
  %s4 = inlined_call_operand.vmem [shape: f32[8,1], index: 4, kind: input, shape index: {}]
  %s5 = inlined_call_operand.vmem [shape: f32[8,24], index: 5, kind: input, shape index: {}]
  %s6 = inlined_call_operand.vmem [shape: f32[8,1], index: 6, kind: input, shape index: {}]
  %s7 = inlined_call_operand.vmem [shape: f32[4,24], index: 7, kind: input, shape index: {}]
  %s8 = inlined_call_operand.vmem [shape: f32[4,1], index: 8, kind: input, shape index: {}]
  %s9 = inlined_call_operand.vmem [shape: f32[2,12], index: 9, kind: input, shape index: {}]
  %s10 = inlined_call_operand.vmem [shape: f32[2,1], index: 10, kind: input, shape index: {}]
  %s11 = inlined_call_operand.vmem [shape: f32[2,6], index: 11, kind: input, shape index: {}]
  %s12 = inlined_call_operand.vmem [shape: f32[2,1], index: 12, kind: input, shape index: {}]
  %s13 = inlined_call_operand.hbm [shape: f32[2,2,16], index: 13, kind: output, shape index: {}]
  %s14 = sld [smem:[#allocation0]]
  $region85: #{generator_forward.1} parent=0
    _
  %s16 = ssub.s32 1, %s14
  %s17 = scalar_select 0, %s16, %s14
  $region1: #{generator_forward.1} parent=0
    #allocation3 [shape = 'u8[2048]{0}', space=vmem, size = 0x800, scoped, tag = 'output window, operand 0']
    #allocation4 [shape = 's32[2]{0}', space=sflag, size = 0x8, scoped, tag = 'scoped memory for generator_forward.1']
    %18 = vsyncpa [#allocation4], 0
    %s19 = scalar_lea.sflag [#allocation4], 1
    %20 = vsyncpa %s19, 0
    loop: start=0, step=1, limit=4
    $region2: #{generator_forward.1} parent=1 // loop_pre_header
      _
    $region3: #{generator_forward.1} parent=1 // loop_header
      %s22 = sphi 0, %s26
      %p23 = scmp.ge.s32.totalorder %s22, 4
      %s32 = sphi 0, %s34
      %s35 = sphi 0, %s32
      %s36 = sphi 0, %s35
      %s52 = sphi 0, %s36
      %s56 = sphi 0, %s56
      %s58 = sphi 0, %s56
      %s59 = sphi 0, %s58
      %s73 = sphi 0, %s59
      %s77 = sphi 0, %s77
      %s79 = sphi 0, %s77
      %s80 = sphi 0, %s79
      %s94 = sphi 0, %s80
      %s98 = sphi 0, %s98
      %s100 = sphi 0, %s98
      %s101 = sphi 0, %s100
      %s115 = sphi 0, %s101
      %s119 = sphi 0, %s119
      %s121 = sphi 0, %s119
      %s122 = sphi 0, %s121
      %s136 = sphi 0, %s122
      %s140 = sphi 0, %s140
      %s142 = sphi 0, %s140
      %s143 = sphi 0, %s142
      %s157 = sphi 0, %s143
      %s161 = sphi 0, %s161
      %s163 = sphi 0, %s161
      %s164 = sphi 0, %s163
      %s178 = sphi 0, %s164
      %s182 = sphi 0, %s182
      %s184 = sphi 0, %s182
      %s185 = sphi 0, %s184
      %s199 = sphi 0, %s185
      %s203 = sphi 0, %s203
      %s205 = sphi 0, %s203
      %s206 = sphi 0, %s205
      %s220 = sphi 0, %s206
      %s224 = sphi 0, %s224
      %s226 = sphi 0, %s224
      %s227 = sphi 0, %s226
      %s241 = sphi 0, %s227
      %s245 = sphi 0, %s245
      %s247 = sphi 0, %s245
      %s248 = sphi 0, %s247
      %s262 = sphi 0, %s248
      %s266 = sphi 0, %s266
      %s268 = sphi 0, %s266
      %s269 = sphi 0, %s268
      %s283 = sphi 0, %s269
      %s287 = sphi 0, %s287
      %s289 = sphi 0, %s287
      %s290 = sphi 0, %s289
      %s304 = sphi 0, %s290
      %s310 = sphi 0, %s312
      %s313 = sphi 0, %s310
      %s314 = sphi 0, %s313
      %s330 = sphi 0, %s314
    $region4: #{generator_forward.1} parent=1 // loop_header_branch
      %25 = sbr.rel (%p23) target = $region8
    $region5: #{generator_forward.1} parent=1 // loop_body
      %s27 = ssub.s32 %s22, 1
      %s28 = ssub.s32 %s22, 2
      %s29 = sadd.s32 %s22, 1
      %s30 = ssub.s32 %s22, %s29
      %p31 = scmp.eq.s32.totalorder %s30, 0
      %s33 = sadd.s32 %s32, 1
      %s34 = scalar_select %p31, %s32, %s33
      %p37 = pneg %p31
      %p38 = scmp.eq.s32.totalorder %s22, 1
      %p39 = por %p37, %p38
      %p40 = scmp.ne.s32.totalorder %s32, %s35
      %p41 = scmp.eq.s32.totalorder %s22, 0
      %p42 = por %p40, %p41
      %p43 = scmp.ne.s32.totalorder %s32, %s35
      %p44 = scmp.eq.s32.totalorder %s27, 1
      %p45 = por %p43, %p44
      %p46 = scmp.ne.s32.totalorder %s35, %s36
      %p47 = scmp.eq.s32.totalorder %s27, 0
      %p48 = por %p46, %p47
      %p49 = scmp.ne.s32.totalorder %s35, %s36
      %p50 = scmp.eq.s32.totalorder %s28, 1
      %p51 = por %p49, %p50
      %p53 = scmp.ne.s32.totalorder %s36, %s52
      %p54 = scmp.eq.s32.totalorder %s28, 0
      %p55 = por %p53, %p54
      %s57 = sadd.s32 %s56, 1
      %p60 = scmp.eq.s32.totalorder %s22, 1
      %p61 = scmp.ne.s32.totalorder %s56, %s58
      %p62 = scmp.eq.s32.totalorder %s22, 0
      %p63 = por %p61, %p62
      %p64 = scmp.ne.s32.totalorder %s56, %s58
      %p65 = scmp.eq.s32.totalorder %s27, 1
      %p66 = por %p64, %p65
      %p67 = scmp.ne.s32.totalorder %s58, %s59
      %p68 = scmp.eq.s32.totalorder %s27, 0
      %p69 = por %p67, %p68
      %p70 = scmp.ne.s32.totalorder %s58, %s59
      %p71 = scmp.eq.s32.totalorder %s28, 1
      %p72 = por %p70, %p71
      %p74 = scmp.ne.s32.totalorder %s59, %s73
      %p75 = scmp.eq.s32.totalorder %s28, 0
      %p76 = por %p74, %p75
      %s78 = sadd.s32 %s77, 1
      %p81 = scmp.eq.s32.totalorder %s22, 1
      %p82 = scmp.ne.s32.totalorder %s77, %s79
      %p83 = scmp.eq.s32.totalorder %s22, 0
      %p84 = por %p82, %p83
      %p85 = scmp.ne.s32.totalorder %s77, %s79
      %p86 = scmp.eq.s32.totalorder %s27, 1
      %p87 = por %p85, %p86
      %p88 = scmp.ne.s32.totalorder %s79, %s80
      %p89 = scmp.eq.s32.totalorder %s27, 0
      %p90 = por %p88, %p89
      %p91 = scmp.ne.s32.totalorder %s79, %s80
      %p92 = scmp.eq.s32.totalorder %s28, 1
      %p93 = por %p91, %p92
      %p95 = scmp.ne.s32.totalorder %s80, %s94
      %p96 = scmp.eq.s32.totalorder %s28, 0
      %p97 = por %p95, %p96
      %s99 = sadd.s32 %s98, 1
      %p102 = scmp.eq.s32.totalorder %s22, 1
      %p103 = scmp.ne.s32.totalorder %s98, %s100
      %p104 = scmp.eq.s32.totalorder %s22, 0
      %p105 = por %p103, %p104
      %p106 = scmp.ne.s32.totalorder %s98, %s100
      %p107 = scmp.eq.s32.totalorder %s27, 1
      %p108 = por %p106, %p107
      %p109 = scmp.ne.s32.totalorder %s100, %s101
      %p110 = scmp.eq.s32.totalorder %s27, 0
      %p111 = por %p109, %p110
      %p112 = scmp.ne.s32.totalorder %s100, %s101
      %p113 = scmp.eq.s32.totalorder %s28, 1
      %p114 = por %p112, %p113
      %p116 = scmp.ne.s32.totalorder %s101, %s115
      %p117 = scmp.eq.s32.totalorder %s28, 0
      %p118 = por %p116, %p117
      %s120 = sadd.s32 %s119, 1
      %p123 = scmp.eq.s32.totalorder %s22, 1
      %p124 = scmp.ne.s32.totalorder %s119, %s121
      %p125 = scmp.eq.s32.totalorder %s22, 0
      %p126 = por %p124, %p125
      %p127 = scmp.ne.s32.totalorder %s119, %s121
      %p128 = scmp.eq.s32.totalorder %s27, 1
      %p129 = por %p127, %p128
      %p130 = scmp.ne.s32.totalorder %s121, %s122
      %p131 = scmp.eq.s32.totalorder %s27, 0
      %p132 = por %p130, %p131
      %p133 = scmp.ne.s32.totalorder %s121, %s122
      %p134 = scmp.eq.s32.totalorder %s28, 1
      %p135 = por %p133, %p134
      %p137 = scmp.ne.s32.totalorder %s122, %s136
      %p138 = scmp.eq.s32.totalorder %s28, 0
      %p139 = por %p137, %p138
      %s141 = sadd.s32 %s140, 1
      %p144 = scmp.eq.s32.totalorder %s22, 1
      %p145 = scmp.ne.s32.totalorder %s140, %s142
      %p146 = scmp.eq.s32.totalorder %s22, 0
      %p147 = por %p145, %p146
      %p148 = scmp.ne.s32.totalorder %s140, %s142
      %p149 = scmp.eq.s32.totalorder %s27, 1
      %p150 = por %p148, %p149
      %p151 = scmp.ne.s32.totalorder %s142, %s143
      %p152 = scmp.eq.s32.totalorder %s27, 0
      %p153 = por %p151, %p152
      %p154 = scmp.ne.s32.totalorder %s142, %s143
      %p155 = scmp.eq.s32.totalorder %s28, 1
      %p156 = por %p154, %p155
      %p158 = scmp.ne.s32.totalorder %s143, %s157
      %p159 = scmp.eq.s32.totalorder %s28, 0
      %p160 = por %p158, %p159
      %s162 = sadd.s32 %s161, 1
      %p165 = scmp.eq.s32.totalorder %s22, 1
      %p166 = scmp.ne.s32.totalorder %s161, %s163
      %p167 = scmp.eq.s32.totalorder %s22, 0
      %p168 = por %p166, %p167
      %p169 = scmp.ne.s32.totalorder %s161, %s163
      %p170 = scmp.eq.s32.totalorder %s27, 1
      %p171 = por %p169, %p170
      %p172 = scmp.ne.s32.totalorder %s163, %s164
      %p173 = scmp.eq.s32.totalorder %s27, 0
      %p174 = por %p172, %p173
      %p175 = scmp.ne.s32.totalorder %s163, %s164
      %p176 = scmp.eq.s32.totalorder %s28, 1
      %p177 = por %p175, %p176
      %p179 = scmp.ne.s32.totalorder %s164, %s178
      %p180 = scmp.eq.s32.totalorder %s28, 0
      %p181 = por %p179, %p180
      %s183 = sadd.s32 %s182, 1
      %p186 = scmp.eq.s32.totalorder %s22, 1
      %p187 = scmp.ne.s32.totalorder %s182, %s184
      %p188 = scmp.eq.s32.totalorder %s22, 0
      %p189 = por %p187, %p188
      %p190 = scmp.ne.s32.totalorder %s182, %s184
      %p191 = scmp.eq.s32.totalorder %s27, 1
      %p192 = por %p190, %p191
      %p193 = scmp.ne.s32.totalorder %s184, %s185
      %p194 = scmp.eq.s32.totalorder %s27, 0
      %p195 = por %p193, %p194
      %p196 = scmp.ne.s32.totalorder %s184, %s185
      %p197 = scmp.eq.s32.totalorder %s28, 1
      %p198 = por %p196, %p197
      %p200 = scmp.ne.s32.totalorder %s185, %s199
      %p201 = scmp.eq.s32.totalorder %s28, 0
      %p202 = por %p200, %p201
      %s204 = sadd.s32 %s203, 1
      %p207 = scmp.eq.s32.totalorder %s22, 1
      %p208 = scmp.ne.s32.totalorder %s203, %s205
      %p209 = scmp.eq.s32.totalorder %s22, 0
      %p210 = por %p208, %p209
      %p211 = scmp.ne.s32.totalorder %s203, %s205
      %p212 = scmp.eq.s32.totalorder %s27, 1
      %p213 = por %p211, %p212
      %p214 = scmp.ne.s32.totalorder %s205, %s206
      %p215 = scmp.eq.s32.totalorder %s27, 0
      %p216 = por %p214, %p215
      %p217 = scmp.ne.s32.totalorder %s205, %s206
      %p218 = scmp.eq.s32.totalorder %s28, 1
      %p219 = por %p217, %p218
      %p221 = scmp.ne.s32.totalorder %s206, %s220
      %p222 = scmp.eq.s32.totalorder %s28, 0
      %p223 = por %p221, %p222
      %s225 = sadd.s32 %s224, 1
      %p228 = scmp.eq.s32.totalorder %s22, 1
      %p229 = scmp.ne.s32.totalorder %s224, %s226
      %p230 = scmp.eq.s32.totalorder %s22, 0
      %p231 = por %p229, %p230
      %p232 = scmp.ne.s32.totalorder %s224, %s226
      %p233 = scmp.eq.s32.totalorder %s27, 1
      %p234 = por %p232, %p233
      %p235 = scmp.ne.s32.totalorder %s226, %s227
      %p236 = scmp.eq.s32.totalorder %s27, 0
      %p237 = por %p235, %p236
      %p238 = scmp.ne.s32.totalorder %s226, %s227
      %p239 = scmp.eq.s32.totalorder %s28, 1
      %p240 = por %p238, %p239
      %p242 = scmp.ne.s32.totalorder %s227, %s241
      %p243 = scmp.eq.s32.totalorder %s28, 0
      %p244 = por %p242, %p243
      %s246 = sadd.s32 %s245, 1
      %p249 = scmp.eq.s32.totalorder %s22, 1
      %p250 = scmp.ne.s32.totalorder %s245, %s247
      %p251 = scmp.eq.s32.totalorder %s22, 0
      %p252 = por %p250, %p251
      %p253 = scmp.ne.s32.totalorder %s245, %s247
      %p254 = scmp.eq.s32.totalorder %s27, 1
      %p255 = por %p253, %p254
      %p256 = scmp.ne.s32.totalorder %s247, %s248
      %p257 = scmp.eq.s32.totalorder %s27, 0
      %p258 = por %p256, %p257
      %p259 = scmp.ne.s32.totalorder %s247, %s248
      %p260 = scmp.eq.s32.totalorder %s28, 1
      %p261 = por %p259, %p260
      %p263 = scmp.ne.s32.totalorder %s248, %s262
      %p264 = scmp.eq.s32.totalorder %s28, 0
      %p265 = por %p263, %p264
      %s267 = sadd.s32 %s266, 1
      %p270 = scmp.eq.s32.totalorder %s22, 1
      %p271 = scmp.ne.s32.totalorder %s266, %s268
      %p272 = scmp.eq.s32.totalorder %s22, 0
      %p273 = por %p271, %p272
      %p274 = scmp.ne.s32.totalorder %s266, %s268
      %p275 = scmp.eq.s32.totalorder %s27, 1
      %p276 = por %p274, %p275
      %p277 = scmp.ne.s32.totalorder %s268, %s269
      %p278 = scmp.eq.s32.totalorder %s27, 0
      %p279 = por %p277, %p278
      %p280 = scmp.ne.s32.totalorder %s268, %s269
      %p281 = scmp.eq.s32.totalorder %s28, 1
      %p282 = por %p280, %p281
      %p284 = scmp.ne.s32.totalorder %s269, %s283
      %p285 = scmp.eq.s32.totalorder %s28, 0
      %p286 = por %p284, %p285
      %s288 = sadd.s32 %s287, 1
      %p291 = scmp.eq.s32.totalorder %s22, 1
      %p292 = scmp.ne.s32.totalorder %s287, %s289
      %p293 = scmp.eq.s32.totalorder %s22, 0
      %p294 = por %p292, %p293
      %p295 = scmp.ne.s32.totalorder %s287, %s289
      %p296 = scmp.eq.s32.totalorder %s27, 1
      %p297 = por %p295, %p296
      %p298 = scmp.ne.s32.totalorder %s289, %s290
      %p299 = scmp.eq.s32.totalorder %s27, 0
      %p300 = por %p298, %p299
      %p301 = scmp.ne.s32.totalorder %s289, %s290
      %p302 = scmp.eq.s32.totalorder %s28, 1
      %p303 = por %p301, %p302
      %p305 = scmp.ne.s32.totalorder %s290, %s304
      %p306 = scmp.eq.s32.totalorder %s28, 0
      %p307 = por %p305, %p306
      %s308 = ssub.s32 %s22, %s29
      %p309 = scmp.eq.s32.totalorder %s308, 0
      %s311 = sadd.s32 %s310, 1
      %s312 = scalar_select %p309, %s310, %s311
      %p315 = pneg %p309
      %p316 = scmp.eq.s32.totalorder %s22, 1
      %p317 = por %p315, %p316
      %p318 = scmp.ne.s32.totalorder %s310, %s313
      %p319 = scmp.eq.s32.totalorder %s22, 0
      %p320 = por %p318, %p319
      %p321 = scmp.ne.s32.totalorder %s310, %s313
      %p322 = scmp.eq.s32.totalorder %s27, 1
      %p323 = por %p321, %p322
      %p324 = scmp.ne.s32.totalorder %s313, %s314
      %p325 = scmp.eq.s32.totalorder %s27, 0
      %p326 = por %p324, %p325
      %p327 = scmp.ne.s32.totalorder %s313, %s314
      %p328 = scmp.eq.s32.totalorder %s28, 1
      %p329 = por %p327, %p328
      %p331 = scmp.ne.s32.totalorder %s314, %s330
      %p332 = scmp.eq.s32.totalorder %s28, 0
      %p333 = por %p331, %p332
      %p334 = scmp.le.s32.totalorder 1, %s22
      %p335 = scmp.lt.s32.totalorder %s22, 3
      %p336 = pnand %p334, %p335
      %p337 = pneg %p336
      // Predicated region
      $region9: #{generator_forward.1} parent=5 // pred_check
        _
      $region10: #{generator_forward.1} parent=5 // pred_check_branch
        %339 = sbr.rel (%p336) target = $region12
      $region11: #{generator_forward.1} parent=5 // pred_region
        %s340 = ssub.s32 %s22, 1
        // Predicated region
        $region13: #{generator_forward.1} parent=11 // pred_check
          %p341 = pneg %p69
        $region14: #{generator_forward.1} parent=11 // pred_check_branch
          %343 = sbr.rel (%p341) target = $region16
        $region15: #{generator_forward.1} parent=11 // pred_region
          _
        $region16: #{generator_forward.1} parent=11 // pred_fallthru
          _
        // Predicated region
        $region17: #{generator_forward.1} parent=11 // pred_check
          %p344 = pneg %p90
        $region18: #{generator_forward.1} parent=11 // pred_check_branch
          %346 = sbr.rel (%p344) target = $region20
        $region19: #{generator_forward.1} parent=11 // pred_region
          _
        $region20: #{generator_forward.1} parent=11 // pred_fallthru
          _
        // Predicated region
        $region21: #{generator_forward.1} parent=11 // pred_check
          %p347 = pneg %p111
        $region22: #{generator_forward.1} parent=11 // pred_check_branch
          %349 = sbr.rel (%p347) target = $region24
        $region23: #{generator_forward.1} parent=11 // pred_region
          _
        $region24: #{generator_forward.1} parent=11 // pred_fallthru
          _
        // Predicated region
        $region25: #{generator_forward.1} parent=11 // pred_check
          %p350 = pneg %p132
        $region26: #{generator_forward.1} parent=11 // pred_check_branch
          %352 = sbr.rel (%p350) target = $region28
        $region27: #{generator_forward.1} parent=11 // pred_region
          _
        $region28: #{generator_forward.1} parent=11 // pred_fallthru
          _
        // Predicated region
        $region29: #{generator_forward.1} parent=11 // pred_check
          %p353 = pneg %p153
        $region30: #{generator_forward.1} parent=11 // pred_check_branch
          %355 = sbr.rel (%p353) target = $region32
        $region31: #{generator_forward.1} parent=11 // pred_region
          _
        $region32: #{generator_forward.1} parent=11 // pred_fallthru
          _
        // Predicated region
        $region33: #{generator_forward.1} parent=11 // pred_check
          %p356 = pneg %p174
        $region34: #{generator_forward.1} parent=11 // pred_check_branch
          %358 = sbr.rel (%p356) target = $region36
        $region35: #{generator_forward.1} parent=11 // pred_region
          _
        $region36: #{generator_forward.1} parent=11 // pred_fallthru
          _
        // Predicated region
        $region37: #{generator_forward.1} parent=11 // pred_check
          %p359 = pneg %p195
        $region38: #{generator_forward.1} parent=11 // pred_check_branch
          %361 = sbr.rel (%p359) target = $region40
        $region39: #{generator_forward.1} parent=11 // pred_region
          _
        $region40: #{generator_forward.1} parent=11 // pred_fallthru
          _
        // Predicated region
        $region41: #{generator_forward.1} parent=11 // pred_check
          %p362 = pneg %p216
        $region42: #{generator_forward.1} parent=11 // pred_check_branch
          %364 = sbr.rel (%p362) target = $region44
        $region43: #{generator_forward.1} parent=11 // pred_region
          _
        $region44: #{generator_forward.1} parent=11 // pred_fallthru
          _
        // Predicated region
        $region45: #{generator_forward.1} parent=11 // pred_check
          %p365 = pneg %p237
        $region46: #{generator_forward.1} parent=11 // pred_check_branch
          %367 = sbr.rel (%p365) target = $region48
        $region47: #{generator_forward.1} parent=11 // pred_region
          _
        $region48: #{generator_forward.1} parent=11 // pred_fallthru
          _
        // Predicated region
        $region49: #{generator_forward.1} parent=11 // pred_check
          %p368 = pneg %p258
        $region50: #{generator_forward.1} parent=11 // pred_check_branch
          %370 = sbr.rel (%p368) target = $region52
        $region51: #{generator_forward.1} parent=11 // pred_region
          _
        $region52: #{generator_forward.1} parent=11 // pred_fallthru
          _
        // Predicated region
        $region53: #{generator_forward.1} parent=11 // pred_check
          %p371 = pneg %p279
        $region54: #{generator_forward.1} parent=11 // pred_check_branch
          %373 = sbr.rel (%p371) target = $region56
        $region55: #{generator_forward.1} parent=11 // pred_region
          _
        $region56: #{generator_forward.1} parent=11 // pred_fallthru
          _
        // Predicated region
        $region57: #{generator_forward.1} parent=11 // pred_check
          %p374 = pneg %p300
        $region58: #{generator_forward.1} parent=11 // pred_check_branch
          %376 = sbr.rel (%p374) target = $region60
        $region59: #{generator_forward.1} parent=11 // pred_region
          _
        $region60: #{generator_forward.1} parent=11 // pred_fallthru
          _
      $region12: #{generator_forward.1} parent=5 // pred_fallthru
        _
      %p377 = scmp.lt.s32.totalorder %s22, 2
      // Predicated region
      $region61: #{generator_forward.1} parent=5 // pred_check
        %p378 = pneg %p377
      $region62: #{generator_forward.1} parent=5 // pred_check_branch
        %380 = sbr.rel (%p378) target = $region64
      $region63: #{generator_forward.1} parent=5 // pred_region
        // Predicated region
        $region65: #{generator_forward.1} parent=63 // pred_check
          %p381 = pneg %p42
        $region66: #{generator_forward.1} parent=63 // pred_check_branch
          %383 = sbr.rel (%p381) target = $region68
        $region67: #{generator_forward.1} parent=63 // pred_region
          %p384 = scmp.lt.s32.totalorder %s22, 1
          %s385 = scalar_select %p384, %s22, 1
          %s386 = smul.addr %s385, 2
          %s387 = scalar_lea.vmem %s0, %s386
        $region68: #{generator_forward.1} parent=63 // pred_fallthru
          _
      $region64: #{generator_forward.1} parent=5 // pred_fallthru
        _
      %p388 = scmp.le.s32.totalorder 1, %s22
      %p389 = scmp.lt.s32.totalorder %s22, 3
      %p390 = pnand %p388, %p389
      %p391 = pneg %p390
      // Predicated region
      $region69: #{generator_forward.1} parent=5 // pred_check
        _
      $region70: #{generator_forward.1} parent=5 // pred_check_branch
        %393 = sbr.rel (%p390) target = $region72
      $region71: #{generator_forward.1} parent=5 // pred_region
        %s394 = ssub.s32 %s22, 1
        %p395 = scmp.lt.s32.totalorder %s27, 1
        %s396 = scalar_select %p395, %s27, 1
        %s397 = smul.addr %s396, 2
        %s398 = scalar_lea.vmem %s0, %s397
        %p399 = pneg %p48
        %p400 = pneg %p45
        %p401 = pneg %p69
        %p402 = pneg %p66
        %p403 = pneg %p90
        %p404 = pneg %p87
        %p405 = pneg %p111
        %p406 = pneg %p108
        %p407 = pneg %p132
        %p408 = pneg %p129
        %p409 = pneg %p153
        %p410 = pneg %p150
        %p411 = pneg %p174
        %p412 = pneg %p171
        %p413 = pneg %p195
        %p414 = pneg %p192
        %p415 = pneg %p216
        %p416 = pneg %p213
        %p417 = pneg %p237
        %p418 = pneg %p234
        %p419 = pneg %p258
        %p420 = pneg %p255
        %p421 = pneg %p279
        %p422 = pneg %p276
        %p423 = pneg %p300
        %p424 = pneg %p297
        %p425 = pneg %p326
        %p426 = pneg %p323
        %s427 = sand.u32 %s313, 1
        %s428 = scalar_lea.sflag [#allocation4], %s427
        %s429 = sand.u32 %s313, 1
        %s430 = smul.addr %s429, 2
        %s431 = scalar_lea.vmem [#allocation3], %s430
        %p432 = scmp.lt.s32.totalorder %s27, 1
        %s433 = scalar_select %p432, %s27, 1
        %s434 = smul.addr %s433, 2
        %s435 = scalar_lea.vmem %s0, %s434
        %v436 = vld [vmem:[%s435] sm:$0x3]
        %v437 = vlaneseq
        %v438 = vshrl.u32 %v437, 7
        %v439 = vadd.s32 %v438, 8
        %v440 = vlaneseq
        %v441 = vand.u32 %v440, 127
        %v442 = vsub.s32 %v441, 1
        %vm443 = vcmp.eq.s32.totalorder %v438, %v442
        %vm444 = vcmp.eq.s32.totalorder %v439, %v442
        %v445 = vsel %vm443, 1, 0
        %v446 = vsel %vm444, 1, 0
        %v447 = vcvt.s32.f32 %v445
        %v448 = vcvt.s32.f32 %v446
        %vm449 = vcmask 130048
        %v451 = vsel %vm449, %v436, 0
        %453 = vmatprep.subr.mxu0 0.0
        %454 = vmatpush1.msra.mxu0 %v447
        %455 = vmatprep.subr.mxu0 0.0
        %456 = vmatpush1.msra.mxu0 %v448
        %457 = vmatprep.subr.mxu0 0.0
        %458 = vmatpush1.msra.mxu0 0.0
        %459 = vmatprep.subr.mxu0 0.0
        %460 = vmatpush1.msra.mxu0 0.0
        %461 = vmatprep.subr.mxu0 0.0
        %462 = vmatpush1.msra.mxu0 0.0
        %463 = vmatprep.subr.mxu0 0.0
        %464 = vmatpush1.msra.mxu0 0.0
        %465 = vmatprep.subr.mxu0 0.0
        %466 = vmatpush1.msra.mxu0 0.0
        %467 = vmatprep.subr.mxu0 0.0
        %468 = vmatpush1.msra.mxu0 0.0
        %469 = vmatprep.subr.mxu0 0.0
        %470 = vmatpush1.msra.mxu0 0.0
        %471 = vmatprep.subr.mxu0 0.0
        %472 = vmatpush1.msra.mxu0 0.0
        %473 = vmatprep.subr.mxu0 0.0
        %474 = vmatpush1.msra.mxu0 0.0
        %475 = vmatprep.subr.mxu0 0.0
        %476 = vmatpush1.msra.mxu0 0.0
        %477 = vmatprep.subr.mxu0 0.0
        %478 = vmatpush1.msra.mxu0 0.0
        %479 = vmatprep.subr.mxu0 0.0
        %480 = vmatpush1.msra.mxu0 0.0
        %481 = vmatprep.subr.mxu0 0.0
        %482 = vmatpush1.msra.mxu0 0.0
        %483 = vmatprep.subr.mxu0 0.0
        %484 = vmatpush1.msra.mxu0 0.0
        %485 = vmatprep.subr.mxu0 0.0
        %486 = vmatpush1.msra.mxu0 0.0
        %487 = vmatprep.subr.mxu0 0.0
        %488 = vmatpush1.msra.mxu0 0.0
        %489 = vmatprep.subr.mxu0 0.0
        %490 = vmatpush1.msra.mxu0 0.0
        %491 = vmatprep.subr.mxu0 0.0
        %492 = vmatpush1.msra.mxu0 0.0
        %493 = vmatprep.subr.mxu0 0.0
        %494 = vmatpush1.msra.mxu0 0.0
        %495 = vmatprep.subr.mxu0 0.0
        %496 = vmatpush1.msra.mxu0 0.0
        %497 = vmatprep.subr.mxu0 0.0
        %498 = vmatpush1.msra.mxu0 0.0
        %499 = vmatprep.subr.mxu0 0.0
        %500 = vmatpush1.msra.mxu0 0.0
        %501 = vmatprep.subr.mxu0 0.0
        %502 = vmatpush1.msra.mxu0 0.0
        %503 = vmatprep.subr.mxu0 0.0
        %504 = vmatpush1.msra.mxu0 0.0
        %505 = vmatprep.subr.mxu0 0.0
        %506 = vmatpush1.msra.mxu0 0.0
        %507 = vmatprep.subr.mxu0 0.0
        %508 = vmatpush1.msra.mxu0 0.0
        %509 = vmatprep.subr.mxu0 0.0
        %510 = vmatpush1.msra.mxu0 0.0
        %511 = vmatprep.subr.mxu0 0.0
        %512 = vmatpush1.msra.mxu0 0.0
        %513 = vmatprep.subr.mxu0 0.0
        %514 = vmatpush1.msra.mxu0 0.0
        %515 = vmatprep.subr.mxu0 0.0
        %516 = vmatpush1.msra.mxu0 0.0
        %517 = vmatprep.mubr.f32.mxu0 0.0
        %518 = vmatmul.mubr.f32.gmra.mrb[0].mxu0 %v451
        %v519 = vpop.f32.mrb[0].mxu0
        %v520 = vadd.f32 0.0, %v519
        %v521 = vpop.f32.mrb[0].mxu0
        %522 = vdwg.mxu0
        %v523 = vadd.s32 %v441, 1
        %vm524 = vcmp.eq.s32.totalorder %v438, %v523
        %vm525 = vcmp.eq.s32.totalorder %v439, %v523
        %v526 = vsel %vm524, 1, 0
        %v527 = vsel %vm525, 1, 0
        %v528 = vcvt.s32.f32 %v526
        %v529 = vcvt.s32.f32 %v527
        %530 = vmatprep.subr.mxu0 0.0
        %531 = vmatpush1.msra.mxu0 %v528
        %532 = vmatprep.subr.mxu0 0.0
        %533 = vmatpush1.msra.mxu0 %v529
        %534 = vmatprep.subr.mxu0 0.0
        %535 = vmatpush1.msra.mxu0 0.0
        %536 = vmatprep.subr.mxu0 0.0
        %537 = vmatpush1.msra.mxu0 0.0
        %538 = vmatprep.subr.mxu0 0.0
        %539 = vmatpush1.msra.mxu0 0.0
        %540 = vmatprep.subr.mxu0 0.0
        %541 = vmatpush1.msra.mxu0 0.0
        %542 = vmatprep.subr.mxu0 0.0
        %543 = vmatpush1.msra.mxu0 0.0
        %544 = vmatprep.subr.mxu0 0.0
        %545 = vmatpush1.msra.mxu0 0.0
        %546 = vmatprep.subr.mxu0 0.0
        %547 = vmatpush1.msra.mxu0 0.0
        %548 = vmatprep.subr.mxu0 0.0
        %549 = vmatpush1.msra.mxu0 0.0
        %550 = vmatprep.subr.mxu0 0.0
        %551 = vmatpush1.msra.mxu0 0.0
        %552 = vmatprep.subr.mxu0 0.0
        %553 = vmatpush1.msra.mxu0 0.0
        %554 = vmatprep.subr.mxu0 0.0
        %555 = vmatpush1.msra.mxu0 0.0
        %556 = vmatprep.subr.mxu0 0.0
        %557 = vmatpush1.msra.mxu0 0.0
        %558 = vmatprep.subr.mxu0 0.0
        %559 = vmatpush1.msra.mxu0 0.0
        %560 = vmatprep.subr.mxu0 0.0
        %561 = vmatpush1.msra.mxu0 0.0
        %562 = vmatprep.subr.mxu0 0.0
        %563 = vmatpush1.msra.mxu0 0.0
        %564 = vmatprep.subr.mxu0 0.0
        %565 = vmatpush1.msra.mxu0 0.0
        %566 = vmatprep.subr.mxu0 0.0
        %567 = vmatpush1.msra.mxu0 0.0
        %568 = vmatprep.subr.mxu0 0.0
        %569 = vmatpush1.msra.mxu0 0.0
        %570 = vmatprep.subr.mxu0 0.0
        %571 = vmatpush1.msra.mxu0 0.0
        %572 = vmatprep.subr.mxu0 0.0
        %573 = vmatpush1.msra.mxu0 0.0
        %574 = vmatprep.subr.mxu0 0.0
        %575 = vmatpush1.msra.mxu0 0.0
        %576 = vmatprep.subr.mxu0 0.0
        %577 = vmatpush1.msra.mxu0 0.0
        %578 = vmatprep.subr.mxu0 0.0
        %579 = vmatpush1.msra.mxu0 0.0
        %580 = vmatprep.subr.mxu0 0.0
        %581 = vmatpush1.msra.mxu0 0.0
        %582 = vmatprep.subr.mxu0 0.0
        %583 = vmatpush1.msra.mxu0 0.0
        %584 = vmatprep.subr.mxu0 0.0
        %585 = vmatpush1.msra.mxu0 0.0
        %586 = vmatprep.subr.mxu0 0.0
        %587 = vmatpush1.msra.mxu0 0.0
        %588 = vmatprep.subr.mxu0 0.0
        %589 = vmatpush1.msra.mxu0 0.0
        %590 = vmatprep.subr.mxu0 0.0
        %591 = vmatpush1.msra.mxu0 0.0
        %592 = vmatprep.subr.mxu0 0.0
        %593 = vmatpush1.msra.mxu0 0.0
        %594 = vmatprep.mubr.f32.mxu0 0.0
        %595 = vmatmul.mubr.f32.gmra.mrb[0].mxu0 %v451
        %v596 = vpop.f32.mrb[0].mxu0
        %v597 = vadd.f32 0.0, %v596
        %v598 = vpop.f32.mrb[0].mxu0
        %599 = vdwg.mxu0
        %vm600 = vcmask 123904
        %601 = vst.msk [vmem:[#allocation2] sm:$0x3] %vm600, %v520
        %602 = vst.msk [vmem:[#allocation2 + $0x2] sm:$0x3] %vm600, %v436
        %603 = vst.msk [vmem:[#allocation2 + $0x4] sm:$0x3] %vm600, %v597
        %v604 = vld [vmem:[%s1] sm:$0xf]
        %v605 = vld [vmem:[#allocation2] sm:$0x3f]
        %v606 = vld [vmem:[%s2] sm:$0xf]
        %608 = vset.pattern.permute.xlu0 0
        %609 = vperm.xlu0 %608, %v606
        %v610 = vpop.permute.xlu0 %609
        %vm612 = vcmask 48128
        %v614 = vsel %vm612, %v604, 0
        %vm616 = vcmask 1045504
        %v618 = vsel %vm616, %v605, 0
        %620 = vmatprep.subr.mxu0 0.0
        %621 = vmatpush1.msra.mxu0 %v618
        %622 = vmatprep.subr.mxu0 0.0
        %623 = vmatpush1.msra.mxu0 0.0
        %624 = vmatprep.subr.mxu0 0.0
        %625 = vmatpush1.msra.mxu0 0.0
        %626 = vmatprep.subr.mxu0 0.0
        %627 = vmatpush1.msra.mxu0 0.0
        %628 = vmatprep.subr.mxu0 0.0
        %629 = vmatpush1.msra.mxu0 0.0
        %630 = vmatprep.subr.mxu0 0.0
        %631 = vmatpush1.msra.mxu0 0.0
        %632 = vmatprep.subr.mxu0 0.0
        %633 = vmatpush1.msra.mxu0 0.0
        %634 = vmatprep.subr.mxu0 0.0
        %635 = vmatpush1.msra.mxu0 0.0
        %636 = vmatprep.subr.mxu0 0.0
        %637 = vmatpush1.msra.mxu0 0.0
        %638 = vmatprep.subr.mxu0 0.0
        %639 = vmatpush1.msra.mxu0 0.0
        %640 = vmatprep.subr.mxu0 0.0
        %641 = vmatpush1.msra.mxu0 0.0
        %642 = vmatprep.subr.mxu0 0.0
        %643 = vmatpush1.msra.mxu0 0.0
        %644 = vmatprep.subr.mxu0 0.0
        %645 = vmatpush1.msra.mxu0 0.0
        %646 = vmatprep.subr.mxu0 0.0
        %647 = vmatpush1.msra.mxu0 0.0
        %648 = vmatprep.subr.mxu0 0.0
        %649 = vmatpush1.msra.mxu0 0.0
        %650 = vmatprep.subr.mxu0 0.0
        %651 = vmatpush1.msra.mxu0 0.0
        %652 = vmatprep.subr.mxu0 0.0
        %653 = vmatpush1.msra.mxu0 0.0
        %654 = vmatprep.subr.mxu0 0.0
        %655 = vmatpush1.msra.mxu0 0.0
        %656 = vmatprep.subr.mxu0 0.0
        %657 = vmatpush1.msra.mxu0 0.0
        %658 = vmatprep.subr.mxu0 0.0
        %659 = vmatpush1.msra.mxu0 0.0
        %660 = vmatprep.subr.mxu0 0.0
        %661 = vmatpush1.msra.mxu0 0.0
        %662 = vmatprep.subr.mxu0 0.0
        %663 = vmatpush1.msra.mxu0 0.0
        %664 = vmatprep.subr.mxu0 0.0
        %665 = vmatpush1.msra.mxu0 0.0
        %666 = vmatprep.subr.mxu0 0.0
        %667 = vmatpush1.msra.mxu0 0.0
        %668 = vmatprep.subr.mxu0 0.0
        %669 = vmatpush1.msra.mxu0 0.0
        %670 = vmatprep.subr.mxu0 0.0
        %671 = vmatpush1.msra.mxu0 0.0
        %672 = vmatprep.subr.mxu0 0.0
        %673 = vmatpush1.msra.mxu0 0.0
        %674 = vmatprep.subr.mxu0 0.0
        %675 = vmatpush1.msra.mxu0 0.0
        %676 = vmatprep.subr.mxu0 0.0
        %677 = vmatpush1.msra.mxu0 0.0
        %678 = vmatprep.subr.mxu0 0.0
        %679 = vmatpush1.msra.mxu0 0.0
        %680 = vmatprep.subr.mxu0 0.0
        %681 = vmatpush1.msra.mxu0 0.0
        %682 = vmatprep.subr.mxu0 0.0
        %683 = vmatpush1.msra.mxu0 0.0
        %684 = vmatprep.mubr.f32.mxu0 0.0
        %685 = vmatmul.mubr.f32.gmra.mrb[0].mxu0 %v614
        %v686 = vpop.f32.mrb[0].mxu0
        %v687 = vadd.f32 %v610, %v686
        %v688 = vpop.f32.mrb[0].mxu0
        %689 = vdwg.mxu0
        %vm690 = vcmp.ge.f32.partialorder %v687, 0.0
        %v691 = vmul.f32 %v687, 0.2
        %v692 = vsel %vm690, %v687, %v691
        %v693 = vmul.u32 %v441, 2
        %vm694 = vcmp.eq.s32.totalorder %v438, %v693
        %vm695 = vcmp.eq.s32.totalorder %v439, %v693
        %v696 = vsel %vm694, 1, 0
        %v697 = vsel %vm695, 1, 0
        %v698 = vcvt.s32.f32 %v696
        %v699 = vcvt.s32.f32 %v697
        %v701 = vsel %vm449, %v692, 0
        %703 = vmatprep.subr.mxu0 0.0
        %704 = vmatpush1.msra.mxu0 %v698
        %705 = vmatprep.subr.mxu0 0.0
        %706 = vmatpush1.msra.mxu0 %v699
        %707 = vmatprep.subr.mxu0 0.0
        %708 = vmatpush1.msra.mxu0 0.0
        %709 = vmatprep.subr.mxu0 0.0
        %710 = vmatpush1.msra.mxu0 0.0
        %711 = vmatprep.subr.mxu0 0.0
        %712 = vmatpush1.msra.mxu0 0.0
        %713 = vmatprep.subr.mxu0 0.0
        %714 = vmatpush1.msra.mxu0 0.0
        %715 = vmatprep.subr.mxu0 0.0
        %716 = vmatpush1.msra.mxu0 0.0
        %717 = vmatprep.subr.mxu0 0.0
        %718 = vmatpush1.msra.mxu0 0.0
        %719 = vmatprep.subr.mxu0 0.0
        %720 = vmatpush1.msra.mxu0 0.0
        %721 = vmatprep.subr.mxu0 0.0
        %722 = vmatpush1.msra.mxu0 0.0
        %723 = vmatprep.subr.mxu0 0.0
        %724 = vmatpush1.msra.mxu0 0.0
        %725 = vmatprep.subr.mxu0 0.0
        %726 = vmatpush1.msra.mxu0 0.0
        %727 = vmatprep.subr.mxu0 0.0
        %728 = vmatpush1.msra.mxu0 0.0
        %729 = vmatprep.subr.mxu0 0.0
        %730 = vmatpush1.msra.mxu0 0.0
        %731 = vmatprep.subr.mxu0 0.0
        %732 = vmatpush1.msra.mxu0 0.0
        %733 = vmatprep.subr.mxu0 0.0
        %734 = vmatpush1.msra.mxu0 0.0
        %735 = vmatprep.subr.mxu0 0.0
        %736 = vmatpush1.msra.mxu0 0.0
        %737 = vmatprep.subr.mxu0 0.0
        %738 = vmatpush1.msra.mxu0 0.0
        %739 = vmatprep.subr.mxu0 0.0
        %740 = vmatpush1.msra.mxu0 0.0
        %741 = vmatprep.subr.mxu0 0.0
        %742 = vmatpush1.msra.mxu0 0.0
        %743 = vmatprep.subr.mxu0 0.0
        %744 = vmatpush1.msra.mxu0 0.0
        %745 = vmatprep.subr.mxu0 0.0
        %746 = vmatpush1.msra.mxu0 0.0
        %747 = vmatprep.subr.mxu0 0.0
        %748 = vmatpush1.msra.mxu0 0.0
        %749 = vmatprep.subr.mxu0 0.0
        %750 = vmatpush1.msra.mxu0 0.0
        %751 = vmatprep.subr.mxu0 0.0
        %752 = vmatpush1.msra.mxu0 0.0
        %753 = vmatprep.subr.mxu0 0.0
        %754 = vmatpush1.msra.mxu0 0.0
        %755 = vmatprep.subr.mxu0 0.0
        %756 = vmatpush1.msra.mxu0 0.0
        %757 = vmatprep.subr.mxu0 0.0
        %758 = vmatpush1.msra.mxu0 0.0
        %759 = vmatprep.subr.mxu0 0.0
        %760 = vmatpush1.msra.mxu0 0.0
        %761 = vmatprep.subr.mxu0 0.0
        %762 = vmatpush1.msra.mxu0 0.0
        %763 = vmatprep.subr.mxu0 0.0
        %764 = vmatpush1.msra.mxu0 0.0
        %765 = vmatprep.subr.mxu0 0.0
        %766 = vmatpush1.msra.mxu0 0.0
        %767 = vmatprep.mubr.f32.mxu0 0.0
        %768 = vmatmul.mubr.f32.gmra.mrb[0].mxu0 %v701
        %v769 = vpop.f32.mrb[0].mxu0
        %v770 = vadd.f32 0.0, %v769
        %v771 = vpop.f32.mrb[0].mxu0
        %772 = vdwg.mxu0
        %v773 = vadd.s32 %v693, 1
        %vm774 = vcmp.eq.s32.totalorder %v438, %v773
        %vm775 = vcmp.eq.s32.totalorder %v439, %v773
        %v776 = vsel %vm774, 1, 0
        %v777 = vsel %vm775, 1, 0
        %v778 = vcvt.s32.f32 %v776
        %v779 = vcvt.s32.f32 %v777
        %780 = vmatprep.subr.mxu0 0.0
        %781 = vmatpush1.msra.mxu0 %v778
        %782 = vmatprep.subr.mxu0 0.0
        %783 = vmatpush1.msra.mxu0 %v779
        %784 = vmatprep.subr.mxu0 0.0
        %785 = vmatpush1.msra.mxu0 0.0
        %786 = vmatprep.subr.mxu0 0.0
        %787 = vmatpush1.msra.mxu0 0.0
        %788 = vmatprep.subr.mxu0 0.0
        %789 = vmatpush1.msra.mxu0 0.0
        %790 = vmatprep.subr.mxu0 0.0
        %791 = vmatpush1.msra.mxu0 0.0
        %792 = vmatprep.subr.mxu0 0.0
        %793 = vmatpush1.msra.mxu0 0.0
        %794 = vmatprep.subr.mxu0 0.0
        %795 = vmatpush1.msra.mxu0 0.0
        %796 = vmatprep.subr.mxu0 0.0
        %797 = vmatpush1.msra.mxu0 0.0
        %798 = vmatprep.subr.mxu0 0.0
        %799 = vmatpush1.msra.mxu0 0.0
        %800 = vmatprep.subr.mxu0 0.0
        %801 = vmatpush1.msra.mxu0 0.0
        %802 = vmatprep.subr.mxu0 0.0
        %803 = vmatpush1.msra.mxu0 0.0
        %804 = vmatprep.subr.mxu0 0.0
        %805 = vmatpush1.msra.mxu0 0.0
        %806 = vmatprep.subr.mxu0 0.0
        %807 = vmatpush1.msra.mxu0 0.0
        %808 = vmatprep.subr.mxu0 0.0
        %809 = vmatpush1.msra.mxu0 0.0
        %810 = vmatprep.subr.mxu0 0.0
        %811 = vmatpush1.msra.mxu0 0.0
        %812 = vmatprep.subr.mxu0 0.0
        %813 = vmatpush1.msra.mxu0 0.0
        %814 = vmatprep.subr.mxu0 0.0
        %815 = vmatpush1.msra.mxu0 0.0
        %816 = vmatprep.subr.mxu0 0.0
        %817 = vmatpush1.msra.mxu0 0.0
        %818 = vmatprep.subr.mxu0 0.0
        %819 = vmatpush1.msra.mxu0 0.0
        %820 = vmatprep.subr.mxu0 0.0
        %821 = vmatpush1.msra.mxu0 0.0
        %822 = vmatprep.subr.mxu0 0.0
        %823 = vmatpush1.msra.mxu0 0.0
        %824 = vmatprep.subr.mxu0 0.0
        %825 = vmatpush1.msra.mxu0 0.0
        %826 = vmatprep.subr.mxu0 0.0
        %827 = vmatpush1.msra.mxu0 0.0
        %828 = vmatprep.subr.mxu0 0.0
        %829 = vmatpush1.msra.mxu0 0.0
        %830 = vmatprep.subr.mxu0 0.0
        %831 = vmatpush1.msra.mxu0 0.0
        %832 = vmatprep.subr.mxu0 0.0
        %833 = vmatpush1.msra.mxu0 0.0
        %834 = vmatprep.subr.mxu0 0.0
        %835 = vmatpush1.msra.mxu0 0.0
        %836 = vmatprep.subr.mxu0 0.0
        %837 = vmatpush1.msra.mxu0 0.0
        %838 = vmatprep.subr.mxu0 0.0
        %839 = vmatpush1.msra.mxu0 0.0
        %840 = vmatprep.subr.mxu0 0.0
        %841 = vmatpush1.msra.mxu0 0.0
        %842 = vmatprep.subr.mxu0 0.0
        %843 = vmatpush1.msra.mxu0 0.0
        %844 = vmatprep.mubr.f32.mxu0 0.0
        %845 = vmatmul.mubr.f32.gmra.mrb[0].mxu0 %v701
        %v846 = vpop.f32.mrb[0].mxu0
        %v847 = vadd.f32 0.0, %v846
        %v848 = vpop.f32.mrb[0].mxu0
        %849 = vdwg.mxu0
        %v850 = vmax.f32 %v770, %v847
        %vm851 = vcmask 64512
        %v853 = vsel %vm851, %v850, 0
        %855 = vmatprep.subr.mxu0 0.0
        %856 = vmatpush1.msra.mxu0 %v447
        %857 = vmatprep.subr.mxu0 0.0
        %858 = vmatpush1.msra.mxu0 0.0
        %859 = vmatprep.subr.mxu0 0.0
        %860 = vmatpush1.msra.mxu0 0.0
        %861 = vmatprep.subr.mxu0 0.0
        %862 = vmatpush1.msra.mxu0 0.0
        %863 = vmatprep.subr.mxu0 0.0
        %864 = vmatpush1.msra.mxu0 0.0
        %865 = vmatprep.subr.mxu0 0.0
        %866 = vmatpush1.msra.mxu0 0.0
        %867 = vmatprep.subr.mxu0 0.0
        %868 = vmatpush1.msra.mxu0 0.0
        %869 = vmatprep.subr.mxu0 0.0
        %870 = vmatpush1.msra.mxu0 0.0
        %871 = vmatprep.subr.mxu0 0.0
        %872 = vmatpush1.msra.mxu0 0.0
        %873 = vmatprep.subr.mxu0 0.0
        %874 = vmatpush1.msra.mxu0 0.0
        %875 = vmatprep.subr.mxu0 0.0
        %876 = vmatpush1.msra.mxu0 0.0
        %877 = vmatprep.subr.mxu0 0.0
        %878 = vmatpush1.msra.mxu0 0.0
        %879 = vmatprep.subr.mxu0 0.0
        %880 = vmatpush1.msra.mxu0 0.0
        %881 = vmatprep.subr.mxu0 0.0
        %882 = vmatpush1.msra.mxu0 0.0
        %883 = vmatprep.subr.mxu0 0.0
        %884 = vmatpush1.msra.mxu0 0.0
        %885 = vmatprep.subr.mxu0 0.0
        %886 = vmatpush1.msra.mxu0 0.0
        %887 = vmatprep.subr.mxu0 0.0
        %888 = vmatpush1.msra.mxu0 0.0
        %889 = vmatprep.subr.mxu0 0.0
        %890 = vmatpush1.msra.mxu0 0.0
        %891 = vmatprep.subr.mxu0 0.0
        %892 = vmatpush1.msra.mxu0 0.0
        %893 = vmatprep.subr.mxu0 0.0
        %894 = vmatpush1.msra.mxu0 0.0
        %895 = vmatprep.subr.mxu0 0.0
        %896 = vmatpush1.msra.mxu0 0.0
        %897 = vmatprep.subr.mxu0 0.0
        %898 = vmatpush1.msra.mxu0 0.0
        %899 = vmatprep.subr.mxu0 0.0
        %900 = vmatpush1.msra.mxu0 0.0
        %901 = vmatprep.subr.mxu0 0.0
        %902 = vmatpush1.msra.mxu0 0.0
        %903 = vmatprep.subr.mxu0 0.0
        %904 = vmatpush1.msra.mxu0 0.0
        %905 = vmatprep.subr.mxu0 0.0
        %906 = vmatpush1.msra.mxu0 0.0
        %907 = vmatprep.subr.mxu0 0.0
        %908 = vmatpush1.msra.mxu0 0.0
        %909 = vmatprep.subr.mxu0 0.0
        %910 = vmatpush1.msra.mxu0 0.0
        %911 = vmatprep.subr.mxu0 0.0
        %912 = vmatpush1.msra.mxu0 0.0
        %913 = vmatprep.subr.mxu0 0.0
        %914 = vmatpush1.msra.mxu0 0.0
        %915 = vmatprep.subr.mxu0 0.0
        %916 = vmatpush1.msra.mxu0 0.0
        %917 = vmatprep.subr.mxu0 0.0
        %918 = vmatpush1.msra.mxu0 0.0
        %919 = vmatprep.mubr.f32.mxu0 0.0
        %920 = vmatmul.mubr.f32.gmra.mrb[0].mxu0 %v853
        %v921 = vpop.f32.mrb[0].mxu0
        %v922 = vadd.f32 0.0, %v921
        %v923 = vpop.f32.mrb[0].mxu0
        %924 = vdwg.mxu0
        %925 = vmatprep.subr.mxu0 0.0
        %926 = vmatpush1.msra.mxu0 %v528
        %927 = vmatprep.subr.mxu0 0.0
        %928 = vmatpush1.msra.mxu0 0.0
        %929 = vmatprep.subr.mxu0 0.0
        %930 = vmatpush1.msra.mxu0 0.0
        %931 = vmatprep.subr.mxu0 0.0
        %932 = vmatpush1.msra.mxu0 0.0
        %933 = vmatprep.subr.mxu0 0.0
        %934 = vmatpush1.msra.mxu0 0.0
        %935 = vmatprep.subr.mxu0 0.0
        %936 = vmatpush1.msra.mxu0 0.0
        %937 = vmatprep.subr.mxu0 0.0
        %938 = vmatpush1.msra.mxu0 0.0
        %939 = vmatprep.subr.mxu0 0.0
        %940 = vmatpush1.msra.mxu0 0.0
        %941 = vmatprep.subr.mxu0 0.0
        %942 = vmatpush1.msra.mxu0 0.0
        %943 = vmatprep.subr.mxu0 0.0
        %944 = vmatpush1.msra.mxu0 0.0
        %945 = vmatprep.subr.mxu0 0.0
        %946 = vmatpush1.msra.mxu0 0.0
        %947 = vmatprep.subr.mxu0 0.0
        %948 = vmatpush1.msra.mxu0 0.0
        %949 = vmatprep.subr.mxu0 0.0
        %950 = vmatpush1.msra.mxu0 0.0
        %951 = vmatprep.subr.mxu0 0.0
        %952 = vmatpush1.msra.mxu0 0.0
        %953 = vmatprep.subr.mxu0 0.0
        %954 = vmatpush1.msra.mxu0 0.0
        %955 = vmatprep.subr.mxu0 0.0
        %956 = vmatpush1.msra.mxu0 0.0
        %957 = vmatprep.subr.mxu0 0.0
        %958 = vmatpush1.msra.mxu0 0.0
        %959 = vmatprep.subr.mxu0 0.0
        %960 = vmatpush1.msra.mxu0 0.0
        %961 = vmatprep.subr.mxu0 0.0
        %962 = vmatpush1.msra.mxu0 0.0
        %963 = vmatprep.subr.mxu0 0.0
        %964 = vmatpush1.msra.mxu0 0.0
        %965 = vmatprep.subr.mxu0 0.0
        %966 = vmatpush1.msra.mxu0 0.0
        %967 = vmatprep.subr.mxu0 0.0
        %968 = vmatpush1.msra.mxu0 0.0
        %969 = vmatprep.subr.mxu0 0.0
        %970 = vmatpush1.msra.mxu0 0.0
        %971 = vmatprep.subr.mxu0 0.0
        %972 = vmatpush1.msra.mxu0 0.0
        %973 = vmatprep.subr.mxu0 0.0
        %974 = vmatpush1.msra.mxu0 0.0
        %975 = vmatprep.subr.mxu0 0.0
        %976 = vmatpush1.msra.mxu0 0.0
        %977 = vmatprep.subr.mxu0 0.0
        %978 = vmatpush1.msra.mxu0 0.0
        %979 = vmatprep.subr.mxu0 0.0
        %980 = vmatpush1.msra.mxu0 0.0
        %981 = vmatprep.subr.mxu0 0.0
        %982 = vmatpush1.msra.mxu0 0.0
        %983 = vmatprep.subr.mxu0 0.0
        %984 = vmatpush1.msra.mxu0 0.0
        %985 = vmatprep.subr.mxu0 0.0
        %986 = vmatpush1.msra.mxu0 0.0
        %987 = vmatprep.subr.mxu0 0.0
        %988 = vmatpush1.msra.mxu0 0.0
        %989 = vmatprep.mubr.f32.mxu0 0.0
        %990 = vmatmul.mubr.f32.gmra.mrb[0].mxu0 %v853
        %v991 = vpop.f32.mrb[0].mxu0
        %v992 = vadd.f32 0.0, %v991
        %v993 = vpop.f32.mrb[0].mxu0
        %994 = vdwg.mxu0
        %vm995 = vcmask 60416
        %996 = vst.msk [vmem:[#allocation2] sm:$0xf] %vm995, %v922
        %997 = vst.msk [vmem:[#allocation2 + $0x4] sm:$0xf] %vm995, %v850
        %998 = vst.msk [vmem:[#allocation2 + $0x8] sm:$0xf] %vm995, %v992
        %v999 = vld [vmem:[%s3] sm:$0xff]
        %v1000 = vld [vmem:[#allocation2] sm:$0xff]
        %v1001 = vld [vmem:[#allocation2 + $0x8] sm:$0xf]
        %v1002 = vld [vmem:[%s4] sm:$0xff]
        %1004 = vset.pattern.permute.xlu0 0
        %1005 = vperm.xlu0 %1004, %v1002
        %v1006 = vpop.permute.xlu0 %1005
        %vm1008 = vcmask 97280
        %v1010 = vsel %vm1008, %v999, 0
        %vm1012 = vcmask 1043456
        %v1014 = vsel %vm1012, %v1001, 0
        %1016 = vmatprep.subr.mxu0 0.0
        %1017 = vmatpush1.msra.mxu0 %v1000
        %1018 = vmatprep.subr.mxu0 0.0
        %1019 = vmatpush1.msra.mxu0 %v1014
        %1020 = vmatprep.subr.mxu0 0.0
        %1021 = vmatpush1.msra.mxu0 0.0
        %1022 = vmatprep.subr.mxu0 0.0
        %1023 = vmatpush1.msra.mxu0 0.0
        %1024 = vmatprep.subr.mxu0 0.0
        %1025 = vmatpush1.msra.mxu0 0.0
        %1026 = vmatprep.subr.mxu0 0.0
        %1027 = vmatpush1.msra.mxu0 0.0
        %1028 = vmatprep.subr.mxu0 0.0
        %1029 = vmatpush1.msra.mxu0 0.0
        %1030 = vmatprep.subr.mxu0 0.0
        %1031 = vmatpush1.msra.mxu0 0.0
        %1032 = vmatprep.subr.mxu0 0.0
        %1033 = vmatpush1.msra.mxu0 0.0
        %1034 = vmatprep.subr.mxu0 0.0
        %1035 = vmatpush1.msra.mxu0 0.0
        %1036 = vmatprep.subr.mxu0 0.0
        %1037 = vmatpush1.msra.mxu0 0.0
        %1038 = vmatprep.subr.mxu0 0.0
        %1039 = vmatpush1.msra.mxu0 0.0
        %1040 = vmatprep.subr.mxu0 0.0
        %1041 = vmatpush1.msra.mxu0 0.0
        %1042 = vmatprep.subr.mxu0 0.0
        %1043 = vmatpush1.msra.mxu0 0.0
        %1044 = vmatprep.subr.mxu0 0.0
        %1045 = vmatpush1.msra.mxu0 0.0
        %1046 = vmatprep.subr.mxu0 0.0
        %1047 = vmatpush1.msra.mxu0 0.0
        %1048 = vmatprep.subr.mxu0 0.0
        %1049 = vmatpush1.msra.mxu0 0.0
        %1050 = vmatprep.subr.mxu0 0.0
        %1051 = vmatpush1.msra.mxu0 0.0
        %1052 = vmatprep.subr.mxu0 0.0
        %1053 = vmatpush1.msra.mxu0 0.0
        %1054 = vmatprep.subr.mxu0 0.0
        %1055 = vmatpush1.msra.mxu0 0.0
        %1056 = vmatprep.subr.mxu0 0.0
        %1057 = vmatpush1.msra.mxu0 0.0
        %1058 = vmatprep.subr.mxu0 0.0
        %1059 = vmatpush1.msra.mxu0 0.0
        %1060 = vmatprep.subr.mxu0 0.0
        %1061 = vmatpush1.msra.mxu0 0.0
        %1062 = vmatprep.subr.mxu0 0.0
        %1063 = vmatpush1.msra.mxu0 0.0
        %1064 = vmatprep.subr.mxu0 0.0
        %1065 = vmatpush1.msra.mxu0 0.0
        %1066 = vmatprep.subr.mxu0 0.0
        %1067 = vmatpush1.msra.mxu0 0.0
        %1068 = vmatprep.subr.mxu0 0.0
        %1069 = vmatpush1.msra.mxu0 0.0
        %1070 = vmatprep.subr.mxu0 0.0
        %1071 = vmatpush1.msra.mxu0 0.0
        %1072 = vmatprep.subr.mxu0 0.0
        %1073 = vmatpush1.msra.mxu0 0.0
        %1074 = vmatprep.subr.mxu0 0.0
        %1075 = vmatpush1.msra.mxu0 0.0
        %1076 = vmatprep.subr.mxu0 0.0
        %1077 = vmatpush1.msra.mxu0 0.0
        %1078 = vmatprep.subr.mxu0 0.0
        %1079 = vmatpush1.msra.mxu0 0.0
        %1080 = vmatprep.mubr.f32.mxu0 0.0
        %1081 = vmatmul.mubr.f32.gmra.mrb[0].mxu0 %v1010
        %v1082 = vpop.f32.mrb[0].mxu0
        %v1083 = vadd.f32 %v1006, %v1082
        %v1084 = vpop.f32.mrb[0].mxu0
        %1085 = vdwg.mxu0
        %vm1086 = vcmp.ge.f32.partialorder %v1083, 0.0
        %v1087 = vmul.f32 %v1083, 0.2
        %v1088 = vsel %vm1086, %v1083, %v1087
        %v1090 = vsel %vm851, %v1088, 0
        %1092 = vmatprep.subr.mxu0 0.0
        %1093 = vmatpush1.msra.mxu0 %v698
        %1094 = vmatprep.subr.mxu0 0.0
        %1095 = vmatpush1.msra.mxu0 0.0
        %1096 = vmatprep.subr.mxu0 0.0
        %1097 = vmatpush1.msra.mxu0 0.0
        %1098 = vmatprep.subr.mxu0 0.0
        %1099 = vmatpush1.msra.mxu0 0.0
        %1100 = vmatprep.subr.mxu0 0.0
        %1101 = vmatpush1.msra.mxu0 0.0
        %1102 = vmatprep.subr.mxu0 0.0
        %1103 = vmatpush1.msra.mxu0 0.0
        %1104 = vmatprep.subr.mxu0 0.0
        %1105 = vmatpush1.msra.mxu0 0.0
        %1106 = vmatprep.subr.mxu0 0.0
        %1107 = vmatpush1.msra.mxu0 0.0
        %1108 = vmatprep.subr.mxu0 0.0
        %1109 = vmatpush1.msra.mxu0 0.0
        %1110 = vmatprep.subr.mxu0 0.0
        %1111 = vmatpush1.msra.mxu0 0.0
        %1112 = vmatprep.subr.mxu0 0.0
        %1113 = vmatpush1.msra.mxu0 0.0
        %1114 = vmatprep.subr.mxu0 0.0
        %1115 = vmatpush1.msra.mxu0 0.0
        %1116 = vmatprep.subr.mxu0 0.0
        %1117 = vmatpush1.msra.mxu0 0.0
        %1118 = vmatprep.subr.mxu0 0.0
        %1119 = vmatpush1.msra.mxu0 0.0
        %1120 = vmatprep.subr.mxu0 0.0
        %1121 = vmatpush1.msra.mxu0 0.0
        %1122 = vmatprep.subr.mxu0 0.0
        %1123 = vmatpush1.msra.mxu0 0.0
        %1124 = vmatprep.subr.mxu0 0.0
        %1125 = vmatpush1.msra.mxu0 0.0
        %1126 = vmatprep.subr.mxu0 0.0
        %1127 = vmatpush1.msra.mxu0 0.0
        %1128 = vmatprep.subr.mxu0 0.0
        %1129 = vmatpush1.msra.mxu0 0.0
        %1130 = vmatprep.subr.mxu0 0.0
        %1131 = vmatpush1.msra.mxu0 0.0
        %1132 = vmatprep.subr.mxu0 0.0
        %1133 = vmatpush1.msra.mxu0 0.0
        %1134 = vmatprep.subr.mxu0 0.0
        %1135 = vmatpush1.msra.mxu0 0.0
        %1136 = vmatprep.subr.mxu0 0.0
        %1137 = vmatpush1.msra.mxu0 0.0
        %1138 = vmatprep.subr.mxu0 0.0
        %1139 = vmatpush1.msra.mxu0 0.0
        %1140 = vmatprep.subr.mxu0 0.0
        %1141 = vmatpush1.msra.mxu0 0.0
        %1142 = vmatprep.subr.mxu0 0.0
        %1143 = vmatpush1.msra.mxu0 0.0
        %1144 = vmatprep.subr.mxu0 0.0
        %1145 = vmatpush1.msra.mxu0 0.0
        %1146 = vmatprep.subr.mxu0 0.0
        %1147 = vmatpush1.msra.mxu0 0.0
        %1148 = vmatprep.subr.mxu0 0.0
        %1149 = vmatpush1.msra.mxu0 0.0
        %1150 = vmatprep.subr.mxu0 0.0
        %1151 = vmatpush1.msra.mxu0 0.0
        %1152 = vmatprep.subr.mxu0 0.0
        %1153 = vmatpush1.msra.mxu0 0.0
        %1154 = vmatprep.subr.mxu0 0.0
        %1155 = vmatpush1.msra.mxu0 0.0
        %1156 = vmatprep.mubr.f32.mxu0 0.0
        %1157 = vmatmul.mubr.f32.gmra.mrb[0].mxu0 %v1090
        %v1158 = vpop.f32.mrb[0].mxu0
        %v1159 = vadd.f32 0.0, %v1158
        %v1160 = vpop.f32.mrb[0].mxu0
        %1161 = vdwg.mxu0
        %1162 = vmatprep.subr.mxu0 0.0
        %1163 = vmatpush1.msra.mxu0 %v778
        %1164 = vmatprep.subr.mxu0 0.0
        %1165 = vmatpush1.msra.mxu0 0.0
        %1166 = vmatprep.subr.mxu0 0.0
        %1167 = vmatpush1.msra.mxu0 0.0
        %1168 = vmatprep.subr.mxu0 0.0
        %1169 = vmatpush1.msra.mxu0 0.0
        %1170 = vmatprep.subr.mxu0 0.0
        %1171 = vmatpush1.msra.mxu0 0.0
        %1172 = vmatprep.subr.mxu0 0.0
        %1173 = vmatpush1.msra.mxu0 0.0
        %1174 = vmatprep.subr.mxu0 0.0
        %1175 = vmatpush1.msra.mxu0 0.0
        %1176 = vmatprep.subr.mxu0 0.0
        %1177 = vmatpush1.msra.mxu0 0.0
        %1178 = vmatprep.subr.mxu0 0.0
        %1179 = vmatpush1.msra.mxu0 0.0
        %1180 = vmatprep.subr.mxu0 0.0
        %1181 = vmatpush1.msra.mxu0 0.0
        %1182 = vmatprep.subr.mxu0 0.0
        %1183 = vmatpush1.msra.mxu0 0.0
        %1184 = vmatprep.subr.mxu0 0.0
        %1185 = vmatpush1.msra.mxu0 0.0
        %1186 = vmatprep.subr.mxu0 0.0
        %1187 = vmatpush1.msra.mxu0 0.0
        %1188 = vmatprep.subr.mxu0 0.0
        %1189 = vmatpush1.msra.mxu0 0.0
        %1190 = vmatprep.subr.mxu0 0.0
        %1191 = vmatpush1.msra.mxu0 0.0
        %1192 = vmatprep.subr.mxu0 0.0
        %1193 = vmatpush1.msra.mxu0 0.0
        %1194 = vmatprep.subr.mxu0 0.0
        %1195 = vmatpush1.msra.mxu0 0.0
        %1196 = vmatprep.subr.mxu0 0.0
        %1197 = vmatpush1.msra.mxu0 0.0
        %1198 = vmatprep.subr.mxu0 0.0
        %1199 = vmatpush1.msra.mxu0 0.0
        %1200 = vmatprep.subr.mxu0 0.0
        %1201 = vmatpush1.msra.mxu0 0.0
        %1202 = vmatprep.subr.mxu0 0.0
        %1203 = vmatpush1.msra.mxu0 0.0
        %1204 = vmatprep.subr.mxu0 0.0
        %1205 = vmatpush1.msra.mxu0 0.0
        %1206 = vmatprep.subr.mxu0 0.0
        %1207 = vmatpush1.msra.mxu0 0.0
        %1208 = vmatprep.subr.mxu0 0.0
        %1209 = vmatpush1.msra.mxu0 0.0
        %1210 = vmatprep.subr.mxu0 0.0
        %1211 = vmatpush1.msra.mxu0 0.0
        %1212 = vmatprep.subr.mxu0 0.0
        %1213 = vmatpush1.msra.mxu0 0.0
        %1214 = vmatprep.subr.mxu0 0.0
        %1215 = vmatpush1.msra.mxu0 0.0
        %1216 = vmatprep.subr.mxu0 0.0
        %1217 = vmatpush1.msra.mxu0 0.0
        %1218 = vmatprep.subr.mxu0 0.0
        %1219 = vmatpush1.msra.mxu0 0.0
        %1220 = vmatprep.subr.mxu0 0.0
        %1221 = vmatpush1.msra.mxu0 0.0
        %1222 = vmatprep.subr.mxu0 0.0
        %1223 = vmatpush1.msra.mxu0 0.0
        %1224 = vmatprep.subr.mxu0 0.0
        %1225 = vmatpush1.msra.mxu0 0.0
        %1226 = vmatprep.mubr.f32.mxu0 0.0
        %1227 = vmatmul.mubr.f32.gmra.mrb[0].mxu0 %v1090
        %v1228 = vpop.f32.mrb[0].mxu0
        %v1229 = vadd.f32 0.0, %v1228
        %v1230 = vpop.f32.mrb[0].mxu0
        %1231 = vdwg.mxu0
        %v1232 = vmax.f32 %v1159, %v1229
        %vm1233 = vcmask 31744
        %v1235 = vsel %vm1233, %v1232, 0
        %v1238 = vsel %vm1012, %v447, 0
        %1240 = vmatprep.subr.mxu0 0.0
        %1241 = vmatpush1.msra.mxu0 %v1238
        %1242 = vmatprep.subr.mxu0 0.0
        %1243 = vmatpush1.msra.mxu0 0.0
        %1244 = vmatprep.subr.mxu0 0.0
        %1245 = vmatpush1.msra.mxu0 0.0
        %1246 = vmatprep.subr.mxu0 0.0
        %1247 = vmatpush1.msra.mxu0 0.0
        %1248 = vmatprep.subr.mxu0 0.0
        %1249 = vmatpush1.msra.mxu0 0.0
        %1250 = vmatprep.subr.mxu0 0.0
        %1251 = vmatpush1.msra.mxu0 0.0
        %1252 = vmatprep.subr.mxu0 0.0
        %1253 = vmatpush1.msra.mxu0 0.0
        %1254 = vmatprep.subr.mxu0 0.0
        %1255 = vmatpush1.msra.mxu0 0.0
        %1256 = vmatprep.subr.mxu0 0.0
        %1257 = vmatpush1.msra.mxu0 0.0
        %1258 = vmatprep.subr.mxu0 0.0
        %1259 = vmatpush1.msra.mxu0 0.0
        %1260 = vmatprep.subr.mxu0 0.0
        %1261 = vmatpush1.msra.mxu0 0.0
        %1262 = vmatprep.subr.mxu0 0.0
        %1263 = vmatpush1.msra.mxu0 0.0
        %1264 = vmatprep.subr.mxu0 0.0
        %1265 = vmatpush1.msra.mxu0 0.0
        %1266 = vmatprep.subr.mxu0 0.0
        %1267 = vmatpush1.msra.mxu0 0.0
        %1268 = vmatprep.subr.mxu0 0.0
        %1269 = vmatpush1.msra.mxu0 0.0
        %1270 = vmatprep.subr.mxu0 0.0
        %1271 = vmatpush1.msra.mxu0 0.0
        %1272 = vmatprep.subr.mxu0 0.0
        %1273 = vmatpush1.msra.mxu0 0.0
        %1274 = vmatprep.subr.mxu0 0.0
        %1275 = vmatpush1.msra.mxu0 0.0
        %1276 = vmatprep.subr.mxu0 0.0
        %1277 = vmatpush1.msra.mxu0 0.0
        %1278 = vmatprep.subr.mxu0 0.0
        %1279 = vmatpush1.msra.mxu0 0.0
        %1280 = vmatprep.subr.mxu0 0.0
        %1281 = vmatpush1.msra.mxu0 0.0
        %1282 = vmatprep.subr.mxu0 0.0
        %1283 = vmatpush1.msra.mxu0 0.0
        %1284 = vmatprep.subr.mxu0 0.0
        %1285 = vmatpush1.msra.mxu0 0.0
        %1286 = vmatprep.subr.mxu0 0.0
        %1287 = vmatpush1.msra.mxu0 0.0
        %1288 = vmatprep.subr.mxu0 0.0
        %1289 = vmatpush1.msra.mxu0 0.0
        %1290 = vmatprep.subr.mxu0 0.0
        %1291 = vmatpush1.msra.mxu0 0.0
        %1292 = vmatprep.subr.mxu0 0.0
        %1293 = vmatpush1.msra.mxu0 0.0
        %1294 = vmatprep.subr.mxu0 0.0
        %1295 = vmatpush1.msra.mxu0 0.0
        %1296 = vmatprep.subr.mxu0 0.0
        %1297 = vmatpush1.msra.mxu0 0.0
        %1298 = vmatprep.subr.mxu0 0.0
        %1299 = vmatpush1.msra.mxu0 0.0
        %1300 = vmatprep.subr.mxu0 0.0
        %1301 = vmatpush1.msra.mxu0 0.0
        %1302 = vmatprep.subr.mxu0 0.0
        %1303 = vmatpush1.msra.mxu0 0.0
        %1304 = vmatprep.mubr.f32.mxu0 0.0
        %1305 = vmatmul.mubr.f32.gmra.mrb[0].mxu0 %v1235
        %v1306 = vpop.f32.mrb[0].mxu0
        %v1307 = vadd.f32 0.0, %v1306
        %v1308 = vpop.f32.mrb[0].mxu0
        %1309 = vdwg.mxu0
        %v1311 = vsel %vm1012, %v528, 0
        %1313 = vmatprep.subr.mxu0 0.0
        %1314 = vmatpush1.msra.mxu0 %v1311
        %1315 = vmatprep.subr.mxu0 0.0
        %1316 = vmatpush1.msra.mxu0 0.0
        %1317 = vmatprep.subr.mxu0 0.0
        %1318 = vmatpush1.msra.mxu0 0.0
        %1319 = vmatprep.subr.mxu0 0.0
        %1320 = vmatpush1.msra.mxu0 0.0
        %1321 = vmatprep.subr.mxu0 0.0
        %1322 = vmatpush1.msra.mxu0 0.0
        %1323 = vmatprep.subr.mxu0 0.0
        %1324 = vmatpush1.msra.mxu0 0.0
        %1325 = vmatprep.subr.mxu0 0.0
        %1326 = vmatpush1.msra.mxu0 0.0
        %1327 = vmatprep.subr.mxu0 0.0
        %1328 = vmatpush1.msra.mxu0 0.0
        %1329 = vmatprep.subr.mxu0 0.0
        %1330 = vmatpush1.msra.mxu0 0.0
        %1331 = vmatprep.subr.mxu0 0.0
        %1332 = vmatpush1.msra.mxu0 0.0
        %1333 = vmatprep.subr.mxu0 0.0
        %1334 = vmatpush1.msra.mxu0 0.0
        %1335 = vmatprep.subr.mxu0 0.0
        %1336 = vmatpush1.msra.mxu0 0.0
        %1337 = vmatprep.subr.mxu0 0.0
        %1338 = vmatpush1.msra.mxu0 0.0
        %1339 = vmatprep.subr.mxu0 0.0
        %1340 = vmatpush1.msra.mxu0 0.0
        %1341 = vmatprep.subr.mxu0 0.0
        %1342 = vmatpush1.msra.mxu0 0.0
        %1343 = vmatprep.subr.mxu0 0.0
        %1344 = vmatpush1.msra.mxu0 0.0
        %1345 = vmatprep.subr.mxu0 0.0
        %1346 = vmatpush1.msra.mxu0 0.0
        %1347 = vmatprep.subr.mxu0 0.0
        %1348 = vmatpush1.msra.mxu0 0.0
        %1349 = vmatprep.subr.mxu0 0.0
        %1350 = vmatpush1.msra.mxu0 0.0
        %1351 = vmatprep.subr.mxu0 0.0
        %1352 = vmatpush1.msra.mxu0 0.0
        %1353 = vmatprep.subr.mxu0 0.0
        %1354 = vmatpush1.msra.mxu0 0.0
        %1355 = vmatprep.subr.mxu0 0.0
        %1356 = vmatpush1.msra.mxu0 0.0
        %1357 = vmatprep.subr.mxu0 0.0
        %1358 = vmatpush1.msra.mxu0 0.0
        %1359 = vmatprep.subr.mxu0 0.0
        %1360 = vmatpush1.msra.mxu0 0.0
        %1361 = vmatprep.subr.mxu0 0.0
        %1362 = vmatpush1.msra.mxu0 0.0
        %1363 = vmatprep.subr.mxu0 0.0
        %1364 = vmatpush1.msra.mxu0 0.0
        %1365 = vmatprep.subr.mxu0 0.0
        %1366 = vmatpush1.msra.mxu0 0.0
        %1367 = vmatprep.subr.mxu0 0.0
        %1368 = vmatpush1.msra.mxu0 0.0
        %1369 = vmatprep.subr.mxu0 0.0
        %1370 = vmatpush1.msra.mxu0 0.0
        %1371 = vmatprep.subr.mxu0 0.0
        %1372 = vmatpush1.msra.mxu0 0.0
        %1373 = vmatprep.subr.mxu0 0.0
        %1374 = vmatpush1.msra.mxu0 0.0
        %1375 = vmatprep.subr.mxu0 0.0
        %1376 = vmatpush1.msra.mxu0 0.0
        %1377 = vmatprep.mubr.f32.mxu0 0.0
        %1378 = vmatmul.mubr.f32.gmra.mrb[0].mxu0 %v1235
        %v1379 = vpop.f32.mrb[0].mxu0
        %v1380 = vadd.f32 0.0, %v1379
        %v1381 = vpop.f32.mrb[0].mxu0
        %1382 = vdwg.mxu0
        %1383 = vst.msk [vmem:[#allocation2] sm:$0xff] %vm1233, %v1307
        %1384 = vst.msk [vmem:[#allocation2 + $0x8] sm:$0xff] %vm1233, %v1232
        %1385 = vst.msk [vmem:[#allocation2 + $0x10] sm:$0xff] %vm1233, %v1380
        %v1386 = vld [vmem:[%s5] sm:$0xff]
        %v1387 = vld [vmem:[#allocation2] sm:$0xff]
        %v1388 = vld [vmem:[#allocation2 + $0x8] sm:$0xff]
        %v1389 = vld [vmem:[#allocation2 + $0x10] sm:$0xff]
        %v1390 = vld [vmem:[%s6] sm:$0xff]
        %1392 = vset.pattern.permute.xlu0 0
        %1393 = vperm.xlu0 %1392, %v1390
        %v1394 = vpop.permute.xlu0 %1393
        %vm1396 = vcmask 195584
        %v1398 = vsel %vm1396, %v1386, 0
        %1400 = vmatprep.subr.mxu0 0.0
        %1401 = vmatpush1.msra.mxu0 %v1387
        %1402 = vmatprep.subr.mxu0 0.0
        %1403 = vmatpush1.msra.mxu0 %v1388
        %1404 = vmatprep.subr.mxu0 0.0
        %1405 = vmatpush1.msra.mxu0 %v1389
        %1406 = vmatprep.subr.mxu0 0.0
        %1407 = vmatpush1.msra.mxu0 0.0
        %1408 = vmatprep.subr.mxu0 0.0
        %1409 = vmatpush1.msra.mxu0 0.0
        %1410 = vmatprep.subr.mxu0 0.0
        %1411 = vmatpush1.msra.mxu0 0.0
        %1412 = vmatprep.subr.mxu0 0.0
        %1413 = vmatpush1.msra.mxu0 0.0
        %1414 = vmatprep.subr.mxu0 0.0
        %1415 = vmatpush1.msra.mxu0 0.0
        %1416 = vmatprep.subr.mxu0 0.0
        %1417 = vmatpush1.msra.mxu0 0.0
        %1418 = vmatprep.subr.mxu0 0.0
        %1419 = vmatpush1.msra.mxu0 0.0
        %1420 = vmatprep.subr.mxu0 0.0
        %1421 = vmatpush1.msra.mxu0 0.0
        %1422 = vmatprep.subr.mxu0 0.0
        %1423 = vmatpush1.msra.mxu0 0.0
        %1424 = vmatprep.subr.mxu0 0.0
        %1425 = vmatpush1.msra.mxu0 0.0
        %1426 = vmatprep.subr.mxu0 0.0
        %1427 = vmatpush1.msra.mxu0 0.0
        %1428 = vmatprep.subr.mxu0 0.0
        %1429 = vmatpush1.msra.mxu0 0.0
        %1430 = vmatprep.subr.mxu0 0.0
        %1431 = vmatpush1.msra.mxu0 0.0
        %1432 = vmatprep.subr.mxu0 0.0
        %1433 = vmatpush1.msra.mxu0 0.0
        %1434 = vmatprep.subr.mxu0 0.0
        %1435 = vmatpush1.msra.mxu0 0.0
        %1436 = vmatprep.subr.mxu0 0.0
        %1437 = vmatpush1.msra.mxu0 0.0
        %1438 = vmatprep.subr.mxu0 0.0
        %1439 = vmatpush1.msra.mxu0 0.0
        %1440 = vmatprep.subr.mxu0 0.0
        %1441 = vmatpush1.msra.mxu0 0.0
        %1442 = vmatprep.subr.mxu0 0.0
        %1443 = vmatpush1.msra.mxu0 0.0
        %1444 = vmatprep.subr.mxu0 0.0
        %1445 = vmatpush1.msra.mxu0 0.0
        %1446 = vmatprep.subr.mxu0 0.0
        %1447 = vmatpush1.msra.mxu0 0.0
        %1448 = vmatprep.subr.mxu0 0.0
        %1449 = vmatpush1.msra.mxu0 0.0
        %1450 = vmatprep.subr.mxu0 0.0
        %1451 = vmatpush1.msra.mxu0 0.0
        %1452 = vmatprep.subr.mxu0 0.0
        %1453 = vmatpush1.msra.mxu0 0.0
        %1454 = vmatprep.subr.mxu0 0.0
        %1455 = vmatpush1.msra.mxu0 0.0
        %1456 = vmatprep.subr.mxu0 0.0
        %1457 = vmatpush1.msra.mxu0 0.0
        %1458 = vmatprep.subr.mxu0 0.0
        %1459 = vmatpush1.msra.mxu0 0.0
        %1460 = vmatprep.subr.mxu0 0.0
        %1461 = vmatpush1.msra.mxu0 0.0
        %1462 = vmatprep.subr.mxu0 0.0
        %1463 = vmatpush1.msra.mxu0 0.0
        %1464 = vmatprep.mubr.f32.mxu0 0.0
        %1465 = vmatmul.mubr.f32.gmra.mrb[0].mxu0 %v1398
        %v1466 = vpop.f32.mrb[0].mxu0
        %v1467 = vadd.f32 %v1394, %v1466
        %v1468 = vpop.f32.mrb[0].mxu0
        %1469 = vdwg.mxu0
        %vm1470 = vcmp.ge.f32.partialorder %v1467, 0.0
        %v1471 = vmul.f32 %v1467, 0.2
        %v1472 = vsel %vm1470, %v1467, %v1471
        %v1473 = vmul.u32 %v438, 2
        %vm1474 = vcmp.eq.s32.totalorder %v441, %v1473
        %v1475 = vadd.s32 %v1473, 1
        %vm1476 = vcmp.eq.s32.totalorder %v441, %v1475
        %vm1477 = vmor %vm1474, %vm1476
        %v1478 = vsel %vm1477, 1, 0
        %v1479 = vcvt.s32.f32 %v1478
        %v1481 = vsel %vm1233, %v1472, 0
        %v1484 = vsel %vm1012, %v1479, 0
        %1486 = vmatprep.subr.mxu0 0.0
        %1487 = vmatpush1.msra.mxu0 %v1484
        %1488 = vmatprep.subr.mxu0 0.0
        %1489 = vmatpush1.msra.mxu0 0.0
        %1490 = vmatprep.subr.mxu0 0.0
        %1491 = vmatpush1.msra.mxu0 0.0
        %1492 = vmatprep.subr.mxu0 0.0
        %1493 = vmatpush1.msra.mxu0 0.0
        %1494 = vmatprep.subr.mxu0 0.0
        %1495 = vmatpush1.msra.mxu0 0.0
        %1496 = vmatprep.subr.mxu0 0.0
        %1497 = vmatpush1.msra.mxu0 0.0
        %1498 = vmatprep.subr.mxu0 0.0
        %1499 = vmatpush1.msra.mxu0 0.0
        %1500 = vmatprep.subr.mxu0 0.0
        %1501 = vmatpush1.msra.mxu0 0.0
        %1502 = vmatprep.subr.mxu0 0.0
        %1503 = vmatpush1.msra.mxu0 0.0
        %1504 = vmatprep.subr.mxu0 0.0
        %1505 = vmatpush1.msra.mxu0 0.0
        %1506 = vmatprep.subr.mxu0 0.0
        %1507 = vmatpush1.msra.mxu0 0.0
        %1508 = vmatprep.subr.mxu0 0.0
        %1509 = vmatpush1.msra.mxu0 0.0
        %1510 = vmatprep.subr.mxu0 0.0
        %1511 = vmatpush1.msra.mxu0 0.0
        %1512 = vmatprep.subr.mxu0 0.0
        %1513 = vmatpush1.msra.mxu0 0.0
        %1514 = vmatprep.subr.mxu0 0.0
        %1515 = vmatpush1.msra.mxu0 0.0
        %1516 = vmatprep.subr.mxu0 0.0
        %1517 = vmatpush1.msra.mxu0 0.0
        %1518 = vmatprep.subr.mxu0 0.0
        %1519 = vmatpush1.msra.mxu0 0.0
        %1520 = vmatprep.subr.mxu0 0.0
        %1521 = vmatpush1.msra.mxu0 0.0
        %1522 = vmatprep.subr.mxu0 0.0
        %1523 = vmatpush1.msra.mxu0 0.0
        %1524 = vmatprep.subr.mxu0 0.0
        %1525 = vmatpush1.msra.mxu0 0.0
        %1526 = vmatprep.subr.mxu0 0.0
        %1527 = vmatpush1.msra.mxu0 0.0
        %1528 = vmatprep.subr.mxu0 0.0
        %1529 = vmatpush1.msra.mxu0 0.0
        %1530 = vmatprep.subr.mxu0 0.0
        %1531 = vmatpush1.msra.mxu0 0.0
        %1532 = vmatprep.subr.mxu0 0.0
        %1533 = vmatpush1.msra.mxu0 0.0
        %1534 = vmatprep.subr.mxu0 0.0
        %1535 = vmatpush1.msra.mxu0 0.0
        %1536 = vmatprep.subr.mxu0 0.0
        %1537 = vmatpush1.msra.mxu0 0.0
        %1538 = vmatprep.subr.mxu0 0.0
        %1539 = vmatpush1.msra.mxu0 0.0
        %1540 = vmatprep.subr.mxu0 0.0
        %1541 = vmatpush1.msra.mxu0 0.0
        %1542 = vmatprep.subr.mxu0 0.0
        %1543 = vmatpush1.msra.mxu0 0.0
        %1544 = vmatprep.subr.mxu0 0.0
        %1545 = vmatpush1.msra.mxu0 0.0
        %1546 = vmatprep.subr.mxu0 0.0
        %1547 = vmatpush1.msra.mxu0 0.0
        %1548 = vmatprep.subr.mxu0 0.0
        %1549 = vmatpush1.msra.mxu0 0.0
        %1550 = vmatprep.mubr.f32.mxu0 0.0
        %1551 = vmatmul.mubr.f32.gmra.mrb[0].mxu0 %v1481
        %v1552 = vpop.f32.mrb[0].mxu0
        %v1553 = vadd.f32 0.0, %v1552
        %v1554 = vpop.f32.mrb[0].mxu0
        %1555 = vdwg.mxu0
        %v1557 = vsel %vm851, %v1553, 0
        %1559 = vmatprep.subr.mxu0 0.0
        %1560 = vmatpush1.msra.mxu0 %v447
        %1561 = vmatprep.subr.mxu0 0.0
        %1562 = vmatpush1.msra.mxu0 0.0
        %1563 = vmatprep.subr.mxu0 0.0
        %1564 = vmatpush1.msra.mxu0 0.0
        %1565 = vmatprep.subr.mxu0 0.0
        %1566 = vmatpush1.msra.mxu0 0.0
        %1567 = vmatprep.subr.mxu0 0.0
        %1568 = vmatpush1.msra.mxu0 0.0
        %1569 = vmatprep.subr.mxu0 0.0
        %1570 = vmatpush1.msra.mxu0 0.0
        %1571 = vmatprep.subr.mxu0 0.0
        %1572 = vmatpush1.msra.mxu0 0.0
        %1573 = vmatprep.subr.mxu0 0.0
        %1574 = vmatpush1.msra.mxu0 0.0
        %1575 = vmatprep.subr.mxu0 0.0
        %1576 = vmatpush1.msra.mxu0 0.0
        %1577 = vmatprep.subr.mxu0 0.0
        %1578 = vmatpush1.msra.mxu0 0.0
        %1579 = vmatprep.subr.mxu0 0.0
        %1580 = vmatpush1.msra.mxu0 0.0
        %1581 = vmatprep.subr.mxu0 0.0
        %1582 = vmatpush1.msra.mxu0 0.0
        %1583 = vmatprep.subr.mxu0 0.0
        %1584 = vmatpush1.msra.mxu0 0.0
        %1585 = vmatprep.subr.mxu0 0.0
        %1586 = vmatpush1.msra.mxu0 0.0
        %1587 = vmatprep.subr.mxu0 0.0
        %1588 = vmatpush1.msra.mxu0 0.0
        %1589 = vmatprep.subr.mxu0 0.0
        %1590 = vmatpush1.msra.mxu0 0.0
        %1591 = vmatprep.subr.mxu0 0.0
        %1592 = vmatpush1.msra.mxu0 0.0
        %1593 = vmatprep.subr.mxu0 0.0
        %1594 = vmatpush1.msra.mxu0 0.0
        %1595 = vmatprep.subr.mxu0 0.0
        %1596 = vmatpush1.msra.mxu0 0.0
        %1597 = vmatprep.subr.mxu0 0.0
        %1598 = vmatpush1.msra.mxu0 0.0
        %1599 = vmatprep.subr.mxu0 0.0
        %1600 = vmatpush1.msra.mxu0 0.0
        %1601 = vmatprep.subr.mxu0 0.0
        %1602 = vmatpush1.msra.mxu0 0.0
        %1603 = vmatprep.subr.mxu0 0.0
        %1604 = vmatpush1.msra.mxu0 0.0
        %1605 = vmatprep.subr.mxu0 0.0
        %1606 = vmatpush1.msra.mxu0 0.0
        %1607 = vmatprep.subr.mxu0 0.0
        %1608 = vmatpush1.msra.mxu0 0.0
        %1609 = vmatprep.subr.mxu0 0.0
        %1610 = vmatpush1.msra.mxu0 0.0
        %1611 = vmatprep.subr.mxu0 0.0
        %1612 = vmatpush1.msra.mxu0 0.0
        %1613 = vmatprep.subr.mxu0 0.0
        %1614 = vmatpush1.msra.mxu0 0.0
        %1615 = vmatprep.subr.mxu0 0.0
        %1616 = vmatpush1.msra.mxu0 0.0
        %1617 = vmatprep.subr.mxu0 0.0
        %1618 = vmatpush1.msra.mxu0 0.0
        %1619 = vmatprep.subr.mxu0 0.0
        %1620 = vmatpush1.msra.mxu0 0.0
        %1621 = vmatprep.subr.mxu0 0.0
        %1622 = vmatpush1.msra.mxu0 0.0
        %1623 = vmatprep.mubr.f32.mxu0 0.0
        %1624 = vmatmul.mubr.f32.gmra.mrb[0].mxu0 %v1557
        %v1625 = vpop.f32.mrb[0].mxu0
        %v1626 = vadd.f32 0.0, %v1625
        %v1627 = vpop.f32.mrb[0].mxu0
        %1628 = vdwg.mxu0
        %1629 = vmatprep.subr.mxu0 0.0
        %1630 = vmatpush1.msra.mxu0 %v528
        %1631 = vmatprep.subr.mxu0 0.0
        %1632 = vmatpush1.msra.mxu0 0.0
        %1633 = vmatprep.subr.mxu0 0.0
        %1634 = vmatpush1.msra.mxu0 0.0
        %1635 = vmatprep.subr.mxu0 0.0
        %1636 = vmatpush1.msra.mxu0 0.0
        %1637 = vmatprep.subr.mxu0 0.0
        %1638 = vmatpush1.msra.mxu0 0.0
        %1639 = vmatprep.subr.mxu0 0.0
        %1640 = vmatpush1.msra.mxu0 0.0
        %1641 = vmatprep.subr.mxu0 0.0
        %1642 = vmatpush1.msra.mxu0 0.0
        %1643 = vmatprep.subr.mxu0 0.0
        %1644 = vmatpush1.msra.mxu0 0.0
        %1645 = vmatprep.subr.mxu0 0.0
        %1646 = vmatpush1.msra.mxu0 0.0
        %1647 = vmatprep.subr.mxu0 0.0
        %1648 = vmatpush1.msra.mxu0 0.0
        %1649 = vmatprep.subr.mxu0 0.0
        %1650 = vmatpush1.msra.mxu0 0.0
        %1651 = vmatprep.subr.mxu0 0.0
        %1652 = vmatpush1.msra.mxu0 0.0
        %1653 = vmatprep.subr.mxu0 0.0
        %1654 = vmatpush1.msra.mxu0 0.0
        %1655 = vmatprep.subr.mxu0 0.0
        %1656 = vmatpush1.msra.mxu0 0.0
        %1657 = vmatprep.subr.mxu0 0.0
        %1658 = vmatpush1.msra.mxu0 0.0
        %1659 = vmatprep.subr.mxu0 0.0
        %1660 = vmatpush1.msra.mxu0 0.0
        %1661 = vmatprep.subr.mxu0 0.0
        %1662 = vmatpush1.msra.mxu0 0.0
        %1663 = vmatprep.subr.mxu0 0.0
        %1664 = vmatpush1.msra.mxu0 0.0
        %1665 = vmatprep.subr.mxu0 0.0
        %1666 = vmatpush1.msra.mxu0 0.0
        %1667 = vmatprep.subr.mxu0 0.0
        %1668 = vmatpush1.msra.mxu0 0.0
        %1669 = vmatprep.subr.mxu0 0.0
        %1670 = vmatpush1.msra.mxu0 0.0
        %1671 = vmatprep.subr.mxu0 0.0
        %1672 = vmatpush1.msra.mxu0 0.0
        %1673 = vmatprep.subr.mxu0 0.0
        %1674 = vmatpush1.msra.mxu0 0.0
        %1675 = vmatprep.subr.mxu0 0.0
        %1676 = vmatpush1.msra.mxu0 0.0
        %1677 = vmatprep.subr.mxu0 0.0
        %1678 = vmatpush1.msra.mxu0 0.0
        %1679 = vmatprep.subr.mxu0 0.0
        %1680 = vmatpush1.msra.mxu0 0.0
        %1681 = vmatprep.subr.mxu0 0.0
        %1682 = vmatpush1.msra.mxu0 0.0
        %1683 = vmatprep.subr.mxu0 0.0
        %1684 = vmatpush1.msra.mxu0 0.0
        %1685 = vmatprep.subr.mxu0 0.0
        %1686 = vmatpush1.msra.mxu0 0.0
        %1687 = vmatprep.subr.mxu0 0.0
        %1688 = vmatpush1.msra.mxu0 0.0
        %1689 = vmatprep.subr.mxu0 0.0
        %1690 = vmatpush1.msra.mxu0 0.0
        %1691 = vmatprep.subr.mxu0 0.0
        %1692 = vmatpush1.msra.mxu0 0.0
        %1693 = vmatprep.mubr.f32.mxu0 0.0
        %1694 = vmatmul.mubr.f32.gmra.mrb[0].mxu0 %v1557
        %v1695 = vpop.f32.mrb[0].mxu0
        %v1696 = vadd.f32 0.0, %v1695
        %v1697 = vpop.f32.mrb[0].mxu0
        %1698 = vdwg.mxu0
        %1699 = vst.msk [vmem:[#allocation2] sm:$0xff] %vm851, %v1626
        %1700 = vst.msk [vmem:[#allocation2 + $0x8] sm:$0xff] %vm851, %v1553
        %1701 = vst.msk [vmem:[#allocation2 + $0x10] sm:$0xff] %vm851, %v1696
        %v1702 = vld [vmem:[%s7] sm:$0xf]
        %v1703 = vld [vmem:[#allocation2] sm:$0xff]
        %v1704 = vld [vmem:[#allocation2 + $0x8] sm:$0xff]
        %v1705 = vld [vmem:[#allocation2 + $0x10] sm:$0xff]
        %v1706 = vld [vmem:[%s8] sm:$0xf]
        %1708 = vset.pattern.permute.xlu0 0
        %1709 = vperm.xlu0 %1708, %v1706
        %v1710 = vpop.permute.xlu0 %1709
        %v1713 = vsel %vm1396, %v1702, 0
        %1715 = vmatprep.subr.mxu0 0.0
        %1716 = vmatpush1.msra.mxu0 %v1703
        %1717 = vmatprep.subr.mxu0 0.0
        %1718 = vmatpush1.msra.mxu0 %v1704
        %1719 = vmatprep.subr.mxu0 0.0
        %1720 = vmatpush1.msra.mxu0 %v1705
        %1721 = vmatprep.subr.mxu0 0.0
        %1722 = vmatpush1.msra.mxu0 0.0
        %1723 = vmatprep.subr.mxu0 0.0
        %1724 = vmatpush1.msra.mxu0 0.0
        %1725 = vmatprep.subr.mxu0 0.0
        %1726 = vmatpush1.msra.mxu0 0.0
        %1727 = vmatprep.subr.mxu0 0.0
        %1728 = vmatpush1.msra.mxu0 0.0
        %1729 = vmatprep.subr.mxu0 0.0
        %1730 = vmatpush1.msra.mxu0 0.0
        %1731 = vmatprep.subr.mxu0 0.0
        %1732 = vmatpush1.msra.mxu0 0.0
        %1733 = vmatprep.subr.mxu0 0.0
        %1734 = vmatpush1.msra.mxu0 0.0
        %1735 = vmatprep.subr.mxu0 0.0
        %1736 = vmatpush1.msra.mxu0 0.0
        %1737 = vmatprep.subr.mxu0 0.0
        %1738 = vmatpush1.msra.mxu0 0.0
        %1739 = vmatprep.subr.mxu0 0.0
        %1740 = vmatpush1.msra.mxu0 0.0
        %1741 = vmatprep.subr.mxu0 0.0
        %1742 = vmatpush1.msra.mxu0 0.0
        %1743 = vmatprep.subr.mxu0 0.0
        %1744 = vmatpush1.msra.mxu0 0.0
        %1745 = vmatprep.subr.mxu0 0.0
        %1746 = vmatpush1.msra.mxu0 0.0
        %1747 = vmatprep.subr.mxu0 0.0
        %1748 = vmatpush1.msra.mxu0 0.0
        %1749 = vmatprep.subr.mxu0 0.0
        %1750 = vmatpush1.msra.mxu0 0.0
        %1751 = vmatprep.subr.mxu0 0.0
        %1752 = vmatpush1.msra.mxu0 0.0
        %1753 = vmatprep.subr.mxu0 0.0
        %1754 = vmatpush1.msra.mxu0 0.0
        %1755 = vmatprep.subr.mxu0 0.0
        %1756 = vmatpush1.msra.mxu0 0.0
        %1757 = vmatprep.subr.mxu0 0.0
        %1758 = vmatpush1.msra.mxu0 0.0
        %1759 = vmatprep.subr.mxu0 0.0
        %1760 = vmatpush1.msra.mxu0 0.0
        %1761 = vmatprep.subr.mxu0 0.0
        %1762 = vmatpush1.msra.mxu0 0.0
        %1763 = vmatprep.subr.mxu0 0.0
        %1764 = vmatpush1.msra.mxu0 0.0
        %1765 = vmatprep.subr.mxu0 0.0
        %1766 = vmatpush1.msra.mxu0 0.0
        %1767 = vmatprep.subr.mxu0 0.0
        %1768 = vmatpush1.msra.mxu0 0.0
        %1769 = vmatprep.subr.mxu0 0.0
        %1770 = vmatpush1.msra.mxu0 0.0
        %1771 = vmatprep.subr.mxu0 0.0
        %1772 = vmatpush1.msra.mxu0 0.0
        %1773 = vmatprep.subr.mxu0 0.0
        %1774 = vmatpush1.msra.mxu0 0.0
        %1775 = vmatprep.subr.mxu0 0.0
        %1776 = vmatpush1.msra.mxu0 0.0
        %1777 = vmatprep.subr.mxu0 0.0
        %1778 = vmatpush1.msra.mxu0 0.0
        %1779 = vmatprep.mubr.f32.mxu0 0.0
        %1780 = vmatmul.mubr.f32.gmra.mrb[0].mxu0 %v1713
        %v1781 = vpop.f32.mrb[0].mxu0
        %v1782 = vadd.f32 %v1710, %v1781
        %v1783 = vpop.f32.mrb[0].mxu0
        %1784 = vdwg.mxu0
        %vm1785 = vcmp.ge.f32.partialorder %v1782, 0.0
        %v1786 = vmul.f32 %v1782, 0.2
        %v1787 = vsel %vm1785, %v1782, %v1786
        %v1789 = vsel %vm851, %v1787, 0
        %1791 = vmatprep.subr.mxu0 0.0
        %1792 = vmatpush1.msra.mxu0 %v1479
        %1793 = vmatprep.subr.mxu0 0.0
        %1794 = vmatpush1.msra.mxu0 0.0
        %1795 = vmatprep.subr.mxu0 0.0
        %1796 = vmatpush1.msra.mxu0 0.0
        %1797 = vmatprep.subr.mxu0 0.0
        %1798 = vmatpush1.msra.mxu0 0.0
        %1799 = vmatprep.subr.mxu0 0.0
        %1800 = vmatpush1.msra.mxu0 0.0
        %1801 = vmatprep.subr.mxu0 0.0
        %1802 = vmatpush1.msra.mxu0 0.0
        %1803 = vmatprep.subr.mxu0 0.0
        %1804 = vmatpush1.msra.mxu0 0.0
        %1805 = vmatprep.subr.mxu0 0.0
        %1806 = vmatpush1.msra.mxu0 0.0
        %1807 = vmatprep.subr.mxu0 0.0
        %1808 = vmatpush1.msra.mxu0 0.0
        %1809 = vmatprep.subr.mxu0 0.0
        %1810 = vmatpush1.msra.mxu0 0.0
        %1811 = vmatprep.subr.mxu0 0.0
        %1812 = vmatpush1.msra.mxu0 0.0
        %1813 = vmatprep.subr.mxu0 0.0
        %1814 = vmatpush1.msra.mxu0 0.0
        %1815 = vmatprep.subr.mxu0 0.0
        %1816 = vmatpush1.msra.mxu0 0.0
        %1817 = vmatprep.subr.mxu0 0.0
        %1818 = vmatpush1.msra.mxu0 0.0
        %1819 = vmatprep.subr.mxu0 0.0
        %1820 = vmatpush1.msra.mxu0 0.0
        %1821 = vmatprep.subr.mxu0 0.0
        %1822 = vmatpush1.msra.mxu0 0.0
        %1823 = vmatprep.subr.mxu0 0.0
        %1824 = vmatpush1.msra.mxu0 0.0
        %1825 = vmatprep.subr.mxu0 0.0
        %1826 = vmatpush1.msra.mxu0 0.0
        %1827 = vmatprep.subr.mxu0 0.0
        %1828 = vmatpush1.msra.mxu0 0.0
        %1829 = vmatprep.subr.mxu0 0.0
        %1830 = vmatpush1.msra.mxu0 0.0
        %1831 = vmatprep.subr.mxu0 0.0
        %1832 = vmatpush1.msra.mxu0 0.0
        %1833 = vmatprep.subr.mxu0 0.0
        %1834 = vmatpush1.msra.mxu0 0.0
        %1835 = vmatprep.subr.mxu0 0.0
        %1836 = vmatpush1.msra.mxu0 0.0
        %1837 = vmatprep.subr.mxu0 0.0
        %1838 = vmatpush1.msra.mxu0 0.0
        %1839 = vmatprep.subr.mxu0 0.0
        %1840 = vmatpush1.msra.mxu0 0.0
        %1841 = vmatprep.subr.mxu0 0.0
        %1842 = vmatpush1.msra.mxu0 0.0
        %1843 = vmatprep.subr.mxu0 0.0
        %1844 = vmatpush1.msra.mxu0 0.0
        %1845 = vmatprep.subr.mxu0 0.0
        %1846 = vmatpush1.msra.mxu0 0.0
        %1847 = vmatprep.subr.mxu0 0.0
        %1848 = vmatpush1.msra.mxu0 0.0
        %1849 = vmatprep.subr.mxu0 0.0
        %1850 = vmatpush1.msra.mxu0 0.0
        %1851 = vmatprep.subr.mxu0 0.0
        %1852 = vmatpush1.msra.mxu0 0.0
        %1853 = vmatprep.subr.mxu0 0.0
        %1854 = vmatpush1.msra.mxu0 0.0
        %1855 = vmatprep.mubr.f32.mxu0 0.0
        %1856 = vmatmul.mubr.f32.gmra.mrb[0].mxu0 %v1789
        %v1857 = vpop.f32.mrb[0].mxu0
        %v1858 = vadd.f32 0.0, %v1857
        %v1859 = vpop.f32.mrb[0].mxu0
        %1860 = vdwg.mxu0
        %v1862 = vsel %vm449, %v1858, 0
        %1864 = vmatprep.subr.mxu0 0.0
        %1865 = vmatpush1.msra.mxu0 %v447
        %1866 = vmatprep.subr.mxu0 0.0
        %1867 = vmatpush1.msra.mxu0 %v448
        %1868 = vmatprep.subr.mxu0 0.0
        %1869 = vmatpush1.msra.mxu0 0.0
        %1870 = vmatprep.subr.mxu0 0.0
        %1871 = vmatpush1.msra.mxu0 0.0
        %1872 = vmatprep.subr.mxu0 0.0
        %1873 = vmatpush1.msra.mxu0 0.0
        %1874 = vmatprep.subr.mxu0 0.0
        %1875 = vmatpush1.msra.mxu0 0.0
        %1876 = vmatprep.subr.mxu0 0.0
        %1877 = vmatpush1.msra.mxu0 0.0
        %1878 = vmatprep.subr.mxu0 0.0
        %1879 = vmatpush1.msra.mxu0 0.0
        %1880 = vmatprep.subr.mxu0 0.0
        %1881 = vmatpush1.msra.mxu0 0.0
        %1882 = vmatprep.subr.mxu0 0.0
        %1883 = vmatpush1.msra.mxu0 0.0
        %1884 = vmatprep.subr.mxu0 0.0
        %1885 = vmatpush1.msra.mxu0 0.0
        %1886 = vmatprep.subr.mxu0 0.0
        %1887 = vmatpush1.msra.mxu0 0.0
        %1888 = vmatprep.subr.mxu0 0.0
        %1889 = vmatpush1.msra.mxu0 0.0
        %1890 = vmatprep.subr.mxu0 0.0
        %1891 = vmatpush1.msra.mxu0 0.0
        %1892 = vmatprep.subr.mxu0 0.0
        %1893 = vmatpush1.msra.mxu0 0.0
        %1894 = vmatprep.subr.mxu0 0.0
        %1895 = vmatpush1.msra.mxu0 0.0
        %1896 = vmatprep.subr.mxu0 0.0
        %1897 = vmatpush1.msra.mxu0 0.0
        %1898 = vmatprep.subr.mxu0 0.0
        %1899 = vmatpush1.msra.mxu0 0.0
        %1900 = vmatprep.subr.mxu0 0.0
        %1901 = vmatpush1.msra.mxu0 0.0
        %1902 = vmatprep.subr.mxu0 0.0
        %1903 = vmatpush1.msra.mxu0 0.0
        %1904 = vmatprep.subr.mxu0 0.0
        %1905 = vmatpush1.msra.mxu0 0.0
        %1906 = vmatprep.subr.mxu0 0.0
        %1907 = vmatpush1.msra.mxu0 0.0
        %1908 = vmatprep.subr.mxu0 0.0
        %1909 = vmatpush1.msra.mxu0 0.0
        %1910 = vmatprep.subr.mxu0 0.0
        %1911 = vmatpush1.msra.mxu0 0.0
        %1912 = vmatprep.subr.mxu0 0.0
        %1913 = vmatpush1.msra.mxu0 0.0
        %1914 = vmatprep.subr.mxu0 0.0
        %1915 = vmatpush1.msra.mxu0 0.0
        %1916 = vmatprep.subr.mxu0 0.0
        %1917 = vmatpush1.msra.mxu0 0.0
        %1918 = vmatprep.subr.mxu0 0.0
        %1919 = vmatpush1.msra.mxu0 0.0
        %1920 = vmatprep.subr.mxu0 0.0
        %1921 = vmatpush1.msra.mxu0 0.0
        %1922 = vmatprep.subr.mxu0 0.0
        %1923 = vmatpush1.msra.mxu0 0.0
        %1924 = vmatprep.subr.mxu0 0.0
        %1925 = vmatpush1.msra.mxu0 0.0
        %1926 = vmatprep.subr.mxu0 0.0
        %1927 = vmatpush1.msra.mxu0 0.0
        %1928 = vmatprep.mubr.f32.mxu0 0.0
        %1929 = vmatmul.mubr.f32.gmra.mrb[0].mxu0 %v1862
        %v1930 = vpop.f32.mrb[0].mxu0
        %v1931 = vadd.f32 0.0, %v1930
        %v1932 = vpop.f32.mrb[0].mxu0
        %1933 = vdwg.mxu0
        %1934 = vmatprep.subr.mxu0 0.0
        %1935 = vmatpush1.msra.mxu0 %v528
        %1936 = vmatprep.subr.mxu0 0.0
        %1937 = vmatpush1.msra.mxu0 %v529
        %1938 = vmatprep.subr.mxu0 0.0
        %1939 = vmatpush1.msra.mxu0 0.0
        %1940 = vmatprep.subr.mxu0 0.0
        %1941 = vmatpush1.msra.mxu0 0.0
        %1942 = vmatprep.subr.mxu0 0.0
        %1943 = vmatpush1.msra.mxu0 0.0
        %1944 = vmatprep.subr.mxu0 0.0
        %1945 = vmatpush1.msra.mxu0 0.0
        %1946 = vmatprep.subr.mxu0 0.0
        %1947 = vmatpush1.msra.mxu0 0.0
        %1948 = vmatprep.subr.mxu0 0.0
        %1949 = vmatpush1.msra.mxu0 0.0
        %1950 = vmatprep.subr.mxu0 0.0
        %1951 = vmatpush1.msra.mxu0 0.0
        %1952 = vmatprep.subr.mxu0 0.0
        %1953 = vmatpush1.msra.mxu0 0.0
        %1954 = vmatprep.subr.mxu0 0.0
        %1955 = vmatpush1.msra.mxu0 0.0
        %1956 = vmatprep.subr.mxu0 0.0
        %1957 = vmatpush1.msra.mxu0 0.0
        %1958 = vmatprep.subr.mxu0 0.0
        %1959 = vmatpush1.msra.mxu0 0.0
        %1960 = vmatprep.subr.mxu0 0.0
        %1961 = vmatpush1.msra.mxu0 0.0
        %1962 = vmatprep.subr.mxu0 0.0
        %1963 = vmatpush1.msra.mxu0 0.0
        %1964 = vmatprep.subr.mxu0 0.0
        %1965 = vmatpush1.msra.mxu0 0.0
        %1966 = vmatprep.subr.mxu0 0.0
        %1967 = vmatpush1.msra.mxu0 0.0
        %1968 = vmatprep.subr.mxu0 0.0
        %1969 = vmatpush1.msra.mxu0 0.0
        %1970 = vmatprep.subr.mxu0 0.0
        %1971 = vmatpush1.msra.mxu0 0.0
        %1972 = vmatprep.subr.mxu0 0.0
        %1973 = vmatpush1.msra.mxu0 0.0
        %1974 = vmatprep.subr.mxu0 0.0
        %1975 = vmatpush1.msra.mxu0 0.0
        %1976 = vmatprep.subr.mxu0 0.0
        %1977 = vmatpush1.msra.mxu0 0.0
        %1978 = vmatprep.subr.mxu0 0.0
        %1979 = vmatpush1.msra.mxu0 0.0
        %1980 = vmatprep.subr.mxu0 0.0
        %1981 = vmatpush1.msra.mxu0 0.0
        %1982 = vmatprep.subr.mxu0 0.0
        %1983 = vmatpush1.msra.mxu0 0.0
        %1984 = vmatprep.subr.mxu0 0.0
        %1985 = vmatpush1.msra.mxu0 0.0
        %1986 = vmatprep.subr.mxu0 0.0
        %1987 = vmatpush1.msra.mxu0 0.0
        %1988 = vmatprep.subr.mxu0 0.0
        %1989 = vmatpush1.msra.mxu0 0.0
        %1990 = vmatprep.subr.mxu0 0.0
        %1991 = vmatpush1.msra.mxu0 0.0
        %1992 = vmatprep.subr.mxu0 0.0
        %1993 = vmatpush1.msra.mxu0 0.0
        %1994 = vmatprep.subr.mxu0 0.0
        %1995 = vmatpush1.msra.mxu0 0.0
        %1996 = vmatprep.subr.mxu0 0.0
        %1997 = vmatpush1.msra.mxu0 0.0
        %1998 = vmatprep.mubr.f32.mxu0 0.0
        %1999 = vmatmul.mubr.f32.gmra.mrb[0].mxu0 %v1862
        %v2000 = vpop.f32.mrb[0].mxu0
        %v2001 = vadd.f32 0.0, %v2000
        %v2002 = vpop.f32.mrb[0].mxu0
        %2003 = vdwg.mxu0
        %vm2004 = vcmask 125952
        %2005 = vst.msk [vmem:[#allocation2] sm:$0xf] %vm2004, %v1931
        %2006 = vst.msk [vmem:[#allocation2 + $0x4] sm:$0xf] %vm2004, %v1858
        %2007 = vst.msk [vmem:[#allocation2 + $0x8] sm:$0xf] %vm2004, %v2001
        %v2008 = vld [vmem:[%s9] sm:$0x3]
        %v2009 = vld [vmem:[#allocation2] sm:$0xff]
        %v2010 = vld [vmem:[#allocation2 + $0x8] sm:$0xf]
        %v2011 = vld [vmem:[%s10] sm:$0x3]
        %2013 = vset.pattern.permute.xlu0 0
        %2014 = vperm.xlu0 %2013, %v2011
        %v2015 = vpop.permute.xlu0 %2014
        %v2018 = vsel %vm1008, %v2008, 0
        %v2021 = vsel %vm1012, %v2010, 0
        %2023 = vmatprep.subr.mxu0 0.0
        %2024 = vmatpush1.msra.mxu0 %v2009
        %2025 = vmatprep.subr.mxu0 0.0
        %2026 = vmatpush1.msra.mxu0 %v2021
        %2027 = vmatprep.subr.mxu0 0.0
        %2028 = vmatpush1.msra.mxu0 0.0
        %2029 = vmatprep.subr.mxu0 0.0
        %2030 = vmatpush1.msra.mxu0 0.0
        %2031 = vmatprep.subr.mxu0 0.0
        %2032 = vmatpush1.msra.mxu0 0.0
        %2033 = vmatprep.subr.mxu0 0.0
        %2034 = vmatpush1.msra.mxu0 0.0
        %2035 = vmatprep.subr.mxu0 0.0
        %2036 = vmatpush1.msra.mxu0 0.0
        %2037 = vmatprep.subr.mxu0 0.0
        %2038 = vmatpush1.msra.mxu0 0.0
        %2039 = vmatprep.subr.mxu0 0.0
        %2040 = vmatpush1.msra.mxu0 0.0
        %2041 = vmatprep.subr.mxu0 0.0
        %2042 = vmatpush1.msra.mxu0 0.0
        %2043 = vmatprep.subr.mxu0 0.0
        %2044 = vmatpush1.msra.mxu0 0.0
        %2045 = vmatprep.subr.mxu0 0.0
        %2046 = vmatpush1.msra.mxu0 0.0
        %2047 = vmatprep.subr.mxu0 0.0
        %2048 = vmatpush1.msra.mxu0 0.0
        %2049 = vmatprep.subr.mxu0 0.0
        %2050 = vmatpush1.msra.mxu0 0.0
        %2051 = vmatprep.subr.mxu0 0.0
        %2052 = vmatpush1.msra.mxu0 0.0
        %2053 = vmatprep.subr.mxu0 0.0
        %2054 = vmatpush1.msra.mxu0 0.0
        %2055 = vmatprep.subr.mxu0 0.0
        %2056 = vmatpush1.msra.mxu0 0.0
        %2057 = vmatprep.subr.mxu0 0.0
        %2058 = vmatpush1.msra.mxu0 0.0
        %2059 = vmatprep.subr.mxu0 0.0
        %2060 = vmatpush1.msra.mxu0 0.0
        %2061 = vmatprep.subr.mxu0 0.0
        %2062 = vmatpush1.msra.mxu0 0.0
        %2063 = vmatprep.subr.mxu0 0.0
        %2064 = vmatpush1.msra.mxu0 0.0
        %2065 = vmatprep.subr.mxu0 0.0
        %2066 = vmatpush1.msra.mxu0 0.0
        %2067 = vmatprep.subr.mxu0 0.0
        %2068 = vmatpush1.msra.mxu0 0.0
        %2069 = vmatprep.subr.mxu0 0.0
        %2070 = vmatpush1.msra.mxu0 0.0
        %2071 = vmatprep.subr.mxu0 0.0
        %2072 = vmatpush1.msra.mxu0 0.0
        %2073 = vmatprep.subr.mxu0 0.0
        %2074 = vmatpush1.msra.mxu0 0.0
        %2075 = vmatprep.subr.mxu0 0.0
        %2076 = vmatpush1.msra.mxu0 0.0
        %2077 = vmatprep.subr.mxu0 0.0
        %2078 = vmatpush1.msra.mxu0 0.0
        %2079 = vmatprep.subr.mxu0 0.0
        %2080 = vmatpush1.msra.mxu0 0.0
        %2081 = vmatprep.subr.mxu0 0.0
        %2082 = vmatpush1.msra.mxu0 0.0
        %2083 = vmatprep.subr.mxu0 0.0
        %2084 = vmatpush1.msra.mxu0 0.0
        %2085 = vmatprep.subr.mxu0 0.0
        %2086 = vmatpush1.msra.mxu0 0.0
        %2087 = vmatprep.mubr.f32.mxu0 0.0
        %2088 = vmatmul.mubr.f32.gmra.mrb[0].mxu0 %v2018
        %v2089 = vpop.f32.mrb[0].mxu0
        %v2090 = vadd.f32 %v2015, %v2089
        %v2091 = vpop.f32.mrb[0].mxu0
        %2092 = vdwg.mxu0
        %vm2093 = vcmp.ge.f32.partialorder %v2090, 0.0
        %v2094 = vmul.f32 %v2090, 0.2
        %v2095 = vsel %vm2093, %v2090, %v2094
        %v2097 = vsel %vm449, %v2095, 0
        %2099 = vmatprep.subr.mxu0 0.0
        %2100 = vmatpush1.msra.mxu0 %v447
        %2101 = vmatprep.subr.mxu0 0.0
        %2102 = vmatpush1.msra.mxu0 %v448
        %2103 = vmatprep.subr.mxu0 0.0
        %2104 = vmatpush1.msra.mxu0 0.0
        %2105 = vmatprep.subr.mxu0 0.0
        %2106 = vmatpush1.msra.mxu0 0.0
        %2107 = vmatprep.subr.mxu0 0.0
        %2108 = vmatpush1.msra.mxu0 0.0
        %2109 = vmatprep.subr.mxu0 0.0
        %2110 = vmatpush1.msra.mxu0 0.0
        %2111 = vmatprep.subr.mxu0 0.0
        %2112 = vmatpush1.msra.mxu0 0.0
        %2113 = vmatprep.subr.mxu0 0.0
        %2114 = vmatpush1.msra.mxu0 0.0
        %2115 = vmatprep.subr.mxu0 0.0
        %2116 = vmatpush1.msra.mxu0 0.0
        %2117 = vmatprep.subr.mxu0 0.0
        %2118 = vmatpush1.msra.mxu0 0.0
        %2119 = vmatprep.subr.mxu0 0.0
        %2120 = vmatpush1.msra.mxu0 0.0
        %2121 = vmatprep.subr.mxu0 0.0
        %2122 = vmatpush1.msra.mxu0 0.0
        %2123 = vmatprep.subr.mxu0 0.0
        %2124 = vmatpush1.msra.mxu0 0.0
        %2125 = vmatprep.subr.mxu0 0.0
        %2126 = vmatpush1.msra.mxu0 0.0
        %2127 = vmatprep.subr.mxu0 0.0
        %2128 = vmatpush1.msra.mxu0 0.0
        %2129 = vmatprep.subr.mxu0 0.0
        %2130 = vmatpush1.msra.mxu0 0.0
        %2131 = vmatprep.subr.mxu0 0.0
        %2132 = vmatpush1.msra.mxu0 0.0
        %2133 = vmatprep.subr.mxu0 0.0
        %2134 = vmatpush1.msra.mxu0 0.0
        %2135 = vmatprep.subr.mxu0 0.0
        %2136 = vmatpush1.msra.mxu0 0.0
        %2137 = vmatprep.subr.mxu0 0.0
        %2138 = vmatpush1.msra.mxu0 0.0
        %2139 = vmatprep.subr.mxu0 0.0
        %2140 = vmatpush1.msra.mxu0 0.0
        %2141 = vmatprep.subr.mxu0 0.0
        %2142 = vmatpush1.msra.mxu0 0.0
        %2143 = vmatprep.subr.mxu0 0.0
        %2144 = vmatpush1.msra.mxu0 0.0
        %2145 = vmatprep.subr.mxu0 0.0
        %2146 = vmatpush1.msra.mxu0 0.0
        %2147 = vmatprep.subr.mxu0 0.0
        %2148 = vmatpush1.msra.mxu0 0.0
        %2149 = vmatprep.subr.mxu0 0.0
        %2150 = vmatpush1.msra.mxu0 0.0
        %2151 = vmatprep.subr.mxu0 0.0
        %2152 = vmatpush1.msra.mxu0 0.0
        %2153 = vmatprep.subr.mxu0 0.0
        %2154 = vmatpush1.msra.mxu0 0.0
        %2155 = vmatprep.subr.mxu0 0.0
        %2156 = vmatpush1.msra.mxu0 0.0
        %2157 = vmatprep.subr.mxu0 0.0
        %2158 = vmatpush1.msra.mxu0 0.0
        %2159 = vmatprep.subr.mxu0 0.0
        %2160 = vmatpush1.msra.mxu0 0.0
        %2161 = vmatprep.subr.mxu0 0.0
        %2162 = vmatpush1.msra.mxu0 0.0
        %2163 = vmatprep.mubr.f32.mxu0 0.0
        %2164 = vmatmul.mubr.f32.gmra.mrb[0].mxu0 %v2097
        %v2165 = vpop.f32.mrb[0].mxu0
        %v2166 = vadd.f32 0.0, %v2165
        %v2167 = vpop.f32.mrb[0].mxu0
        %2168 = vdwg.mxu0
        %2169 = vmatprep.subr.mxu0 0.0
        %2170 = vmatpush1.msra.mxu0 %v528
        %2171 = vmatprep.subr.mxu0 0.0
        %2172 = vmatpush1.msra.mxu0 %v529
        %2173 = vmatprep.subr.mxu0 0.0
        %2174 = vmatpush1.msra.mxu0 0.0
        %2175 = vmatprep.subr.mxu0 0.0
        %2176 = vmatpush1.msra.mxu0 0.0
        %2177 = vmatprep.subr.mxu0 0.0
        %2178 = vmatpush1.msra.mxu0 0.0
        %2179 = vmatprep.subr.mxu0 0.0
        %2180 = vmatpush1.msra.mxu0 0.0
        %2181 = vmatprep.subr.mxu0 0.0
        %2182 = vmatpush1.msra.mxu0 0.0
        %2183 = vmatprep.subr.mxu0 0.0
        %2184 = vmatpush1.msra.mxu0 0.0
        %2185 = vmatprep.subr.mxu0 0.0
        %2186 = vmatpush1.msra.mxu0 0.0
        %2187 = vmatprep.subr.mxu0 0.0
        %2188 = vmatpush1.msra.mxu0 0.0
        %2189 = vmatprep.subr.mxu0 0.0
        %2190 = vmatpush1.msra.mxu0 0.0
        %2191 = vmatprep.subr.mxu0 0.0
        %2192 = vmatpush1.msra.mxu0 0.0
        %2193 = vmatprep.subr.mxu0 0.0
        %2194 = vmatpush1.msra.mxu0 0.0
        %2195 = vmatprep.subr.mxu0 0.0
        %2196 = vmatpush1.msra.mxu0 0.0
        %2197 = vmatprep.subr.mxu0 0.0
        %2198 = vmatpush1.msra.mxu0 0.0
        %2199 = vmatprep.subr.mxu0 0.0
        %2200 = vmatpush1.msra.mxu0 0.0
        %2201 = vmatprep.subr.mxu0 0.0
        %2202 = vmatpush1.msra.mxu0 0.0
        %2203 = vmatprep.subr.mxu0 0.0
        %2204 = vmatpush1.msra.mxu0 0.0
        %2205 = vmatprep.subr.mxu0 0.0
        %2206 = vmatpush1.msra.mxu0 0.0
        %2207 = vmatprep.subr.mxu0 0.0
        %2208 = vmatpush1.msra.mxu0 0.0
        %2209 = vmatprep.subr.mxu0 0.0
        %2210 = vmatpush1.msra.mxu0 0.0
        %2211 = vmatprep.subr.mxu0 0.0
        %2212 = vmatpush1.msra.mxu0 0.0
        %2213 = vmatprep.subr.mxu0 0.0
        %2214 = vmatpush1.msra.mxu0 0.0
        %2215 = vmatprep.subr.mxu0 0.0
        %2216 = vmatpush1.msra.mxu0 0.0
        %2217 = vmatprep.subr.mxu0 0.0
        %2218 = vmatpush1.msra.mxu0 0.0
        %2219 = vmatprep.subr.mxu0 0.0
        %2220 = vmatpush1.msra.mxu0 0.0
        %2221 = vmatprep.subr.mxu0 0.0
        %2222 = vmatpush1.msra.mxu0 0.0
        %2223 = vmatprep.subr.mxu0 0.0
        %2224 = vmatpush1.msra.mxu0 0.0
        %2225 = vmatprep.subr.mxu0 0.0
        %2226 = vmatpush1.msra.mxu0 0.0
        %2227 = vmatprep.subr.mxu0 0.0
        %2228 = vmatpush1.msra.mxu0 0.0
        %2229 = vmatprep.subr.mxu0 0.0
        %2230 = vmatpush1.msra.mxu0 0.0
        %2231 = vmatprep.subr.mxu0 0.0
        %2232 = vmatpush1.msra.mxu0 0.0
        %2233 = vmatprep.mubr.f32.mxu0 0.0
        %2234 = vmatmul.mubr.f32.gmra.mrb[0].mxu0 %v2097
        %v2235 = vpop.f32.mrb[0].mxu0
        %v2236 = vadd.f32 0.0, %v2235
        %v2237 = vpop.f32.mrb[0].mxu0
        %2238 = vdwg.mxu0
        %2239 = vst.msk [vmem:[#allocation2] sm:$0x3] %vm600, %v2166
        %2240 = vst.msk [vmem:[#allocation2 + $0x2] sm:$0x3] %vm600, %v2095
        %2241 = vst.msk [vmem:[#allocation2 + $0x4] sm:$0x3] %vm600, %v2236
        %v2242 = vld [vmem:[%s11] sm:$0x3]
        %v2243 = vld [vmem:[#allocation2] sm:$0x3f]
        %v2244 = vld [vmem:[%s12] sm:$0x3]
        %2246 = vset.pattern.permute.xlu0 0
        %2247 = vperm.xlu0 %2246, %v2244
        %v2248 = vpop.permute.xlu0 %2247
        %v2251 = vsel %vm612, %v2242, 0
        %v2254 = vsel %vm616, %v2243, 0
        %2256 = vmatprep.subr.mxu0 0.0
        %2257 = vmatpush1.msra.mxu0 %v2254
        %2258 = vmatprep.subr.mxu0 0.0
        %2259 = vmatpush1.msra.mxu0 0.0
        %2260 = vmatprep.subr.mxu0 0.0
        %2261 = vmatpush1.msra.mxu0 0.0
        %2262 = vmatprep.subr.mxu0 0.0
        %2263 = vmatpush1.msra.mxu0 0.0
        %2264 = vmatprep.subr.mxu0 0.0
        %2265 = vmatpush1.msra.mxu0 0.0
        %2266 = vmatprep.subr.mxu0 0.0
        %2267 = vmatpush1.msra.mxu0 0.0
        %2268 = vmatprep.subr.mxu0 0.0
        %2269 = vmatpush1.msra.mxu0 0.0
        %2270 = vmatprep.subr.mxu0 0.0
        %2271 = vmatpush1.msra.mxu0 0.0
        %2272 = vmatprep.subr.mxu0 0.0
        %2273 = vmatpush1.msra.mxu0 0.0
        %2274 = vmatprep.subr.mxu0 0.0
        %2275 = vmatpush1.msra.mxu0 0.0
        %2276 = vmatprep.subr.mxu0 0.0
        %2277 = vmatpush1.msra.mxu0 0.0
        %2278 = vmatprep.subr.mxu0 0.0
        %2279 = vmatpush1.msra.mxu0 0.0
        %2280 = vmatprep.subr.mxu0 0.0
        %2281 = vmatpush1.msra.mxu0 0.0
        %2282 = vmatprep.subr.mxu0 0.0
        %2283 = vmatpush1.msra.mxu0 0.0
        %2284 = vmatprep.subr.mxu0 0.0
        %2285 = vmatpush1.msra.mxu0 0.0
        %2286 = vmatprep.subr.mxu0 0.0
        %2287 = vmatpush1.msra.mxu0 0.0
        %2288 = vmatprep.subr.mxu0 0.0
        %2289 = vmatpush1.msra.mxu0 0.0
        %2290 = vmatprep.subr.mxu0 0.0
        %2291 = vmatpush1.msra.mxu0 0.0
        %2292 = vmatprep.subr.mxu0 0.0
        %2293 = vmatpush1.msra.mxu0 0.0
        %2294 = vmatprep.subr.mxu0 0.0
        %2295 = vmatpush1.msra.mxu0 0.0
        %2296 = vmatprep.subr.mxu0 0.0
        %2297 = vmatpush1.msra.mxu0 0.0
        %2298 = vmatprep.subr.mxu0 0.0
        %2299 = vmatpush1.msra.mxu0 0.0
        %2300 = vmatprep.subr.mxu0 0.0
        %2301 = vmatpush1.msra.mxu0 0.0
        %2302 = vmatprep.subr.mxu0 0.0
        %2303 = vmatpush1.msra.mxu0 0.0
        %2304 = vmatprep.subr.mxu0 0.0
        %2305 = vmatpush1.msra.mxu0 0.0
        %2306 = vmatprep.subr.mxu0 0.0
        %2307 = vmatpush1.msra.mxu0 0.0
        %2308 = vmatprep.subr.mxu0 0.0
        %2309 = vmatpush1.msra.mxu0 0.0
        %2310 = vmatprep.subr.mxu0 0.0
        %2311 = vmatpush1.msra.mxu0 0.0
        %2312 = vmatprep.subr.mxu0 0.0
        %2313 = vmatpush1.msra.mxu0 0.0
        %2314 = vmatprep.subr.mxu0 0.0
        %2315 = vmatpush1.msra.mxu0 0.0
        %2316 = vmatprep.subr.mxu0 0.0
        %2317 = vmatpush1.msra.mxu0 0.0
        %2318 = vmatprep.subr.mxu0 0.0
        %2319 = vmatpush1.msra.mxu0 0.0
        %2320 = vmatprep.mubr.f32.mxu0 0.0
        %2321 = vmatmul.mubr.f32.gmra.mrb[0].mxu0 %v2251
        %v2322 = vpop.f32.mrb[0].mxu0
        %v2323 = vadd.f32 %v2248, %v2322
        %v2324 = vpop.f32.mrb[0].mxu0
        %2325 = vdwg.mxu0
        %v2326 = vtanh.pop %v2323
        %2327 = vst.msk [vmem:[%s431] sm:$0x3] %vm600, %v2326
        %s2328 = sand.u32 %s313, 1
        %s2329 = scalar_lea.sflag [#allocation4], %s2328
        %s2330 = sand.u32 %s313, 1
        %s2331 = smul.addr %s2330, 2
        %s2332 = scalar_lea.vmem [#allocation3], %s2331
        // Predicated region
        $region73: #{generator_forward.1} parent=71 // pred_check
          %p2333 = pneg %p323
        $region74: #{generator_forward.1} parent=71 // pred_check_branch
          %2335 = sbr.rel (%p2333) target = $region76
        $region75: #{generator_forward.1} parent=71 // pred_region
          %s2337 = ssub.s32 32, 32
          %2338 = vsyncadd %s2329, %s2337
          %s2339 = smul.addr %s27, 32
          %s2340 = scalar_lea.hbm %s13, %s2339
          %s2342 = sshll.u32 %s2332, 4
          %s2343 = int_to_ptr.vmem [resolvable:$true] %s2342
          %2345 = dma.vmem_to_hbm [thread:$0]  %s2343, 32, %s2340, %s2329
        $region76: #{generator_forward.1} parent=71 // pred_fallthru
          _
      $region72: #{generator_forward.1} parent=5 // pred_fallthru
        _
      %p2346 = scmp.le.s32.totalorder 2, %s22
      // Predicated region
      $region77: #{generator_forward.1} parent=5 // pred_check
        %p2347 = pneg %p2346
      $region78: #{generator_forward.1} parent=5 // pred_check_branch
        %2349 = sbr.rel (%p2347) target = $region80
      $region79: #{generator_forward.1} parent=5 // pred_region
        %s2350 = ssub.s32 %s22, 2
        // Predicated region
        $region81: #{generator_forward.1} parent=79 // pred_check
          %p2351 = pneg %p329
        $region82: #{generator_forward.1} parent=79 // pred_check_branch
          %2353 = sbr.rel (%p2351) target = $region84
        $region83: #{generator_forward.1} parent=79 // pred_region
          %s2354 = sand.u32 %s314, 1
          %s2355 = scalar_lea.sflag [#allocation4], %s2354
          %s2356 = sand.u32 %s314, 1
          %s2357 = smul.addr %s2356, 2
          %s2358 = scalar_lea.vmem [#allocation3], %s2357
          %2359 = dma.done %s2355, 32
        $region84: #{generator_forward.1} parent=79 // pred_fallthru
          _
      $region80: #{generator_forward.1} parent=5 // pred_fallthru
        _
    $region6: #{generator_forward.1} parent=1 // loop_footer
      %s26 = sadd.s32 1, %s22
    $region7: #{generator_forward.1} parent=1 // loop_footer_branch
      %21 = sbr.rel target = $region3
    $region8: #{generator_forward.1} parent=1 // loop_exit
      _
    %2360 = vsyncpa [#allocation4], 1
    %s2361 = scalar_lea.sflag [#allocation4], 1
    %2362 = vsyncpa %s2361, 1

</llo_original>
